<compile_context>
chip_gen: v6e
topology: v6e:2x2x1
jax: 0.10.0
libtpu: 0.0.40
codegen_flags: <defaults>
</compile_context>

<pallas_src>
import functools

import numpy as np
import jax
import jax.numpy as jnp
from jax.experimental import pallas as pl
from jax.experimental.pallas import tpu as pltpu


_VPU_MAX_K = 32       # layers with in_dim <= this use VPU broadcast-MACs, not the MXU
_BF16_ROW_ALIGN = 16  # bf16 sublane tile height
_F32_ROW_ALIGN = 8    # f32 sublane tile height
_LANE = 128


def _round_up(x, m):
    return (x + m - 1) // m * m


def build_layer_config(num_features=2, num_classes=2, max_throughput_multiplier=256):
    """Mirror UnSqueeze.__init__: list of (in_dim, out_dim, has_relu)."""
    layers = []
    nf = num_features
    max_throughput = num_features * max_throughput_multiplier
    while nf < max_throughput:                 # expansion: Linear + ReLU
        layers.append((nf, nf * 2, True))
        nf *= 2
    while nf > num_classes * 2:                # contraction: Linear only
        layers.append((nf, nf // 2, False))
        nf //= 2
    layers.append((nf, nf // 2, False))        # final Linear
    return layers


def init_params(layer_cfg, key):
    """Synthetic init mimicking torch.nn.Linear default (U(-k, k), k=1/sqrt(fan_in))."""
    weights, biases = [], []
    for (din, dout, _) in layer_cfg:
        key, kw, kb = jax.random.split(key, 3)
        bound = 1.0 / (din ** 0.5)
        weights.append(jax.random.uniform(kw, (din, dout), jnp.float32, -bound, bound))
        biases.append(jax.random.uniform(kb, (dout,), jnp.float32, -bound, bound))
    return weights, biases


def make_effective_layers(weights, biases, relu_flags):
    """Keep ReLU layers as-is; fold the trailing ReLU-free chain into one linear layer.

    Returns a list of (W[f32 np], b[f32 np], has_relu). Composition done in f64.
    """
    n = len(weights)
    split = n
    while split > 0 and not relu_flags[split - 1]:
        split -= 1

    eff = []
    for i in range(split):
        eff.append((np.asarray(weights[i], np.float32),
                    np.asarray(biases[i], np.float32),
                    bool(relu_flags[i])))
    if split < n:
        W = np.asarray(weights[split], np.float64)
        b = np.asarray(biases[split], np.float64)
        for w2, b2 in zip(weights[split + 1:], biases[split + 1:]):
            w2 = np.asarray(w2, np.float64)
            b2 = np.asarray(b2, np.float64)
            W = W @ w2
            b = b @ w2 + b2
        eff.append((W.astype(np.float32), b.astype(np.float32), False))
    return eff


def pack_params(eff_layers, vpu_max_k=_VPU_MAX_K):
    """Pack parameters into three resident VMEM slabs + static layer metadata.

      * w_f32  [*, 128] f32 : tiny (VPU) layers + composed final layer
                              (final output padded to 128 lanes -> lane-dense store)
      * w_bf16 [*, 512] bf16: big ReLU (MXU) layers
      * b_f32  [16, 512] f32: one bias row per effective layer

    meta[i] = (path, bias_row, row_off, in_dim, out_dim_used, has_relu)
    """
    n = len(eff_layers)

    infos = []
    f32_rows, bf16_rows = 0, 0
    f32_width, bf16_width, bias_width = _LANE, _LANE, _LANE
    for i, (w, b, relu) in enumerate(eff_layers):
        din, dout = w.shape
        path = "vpu" if din <= vpu_max_k else ("mxu_bf16" if relu else "mxu_f32")
        # Lane-dense final layer: pad its output width to a multiple of 128.
        dout_used = _round_up(dout, _LANE) if i == n - 1 else dout
        if path == "mxu_bf16":
            off = bf16_rows
            bf16_rows += _round_up(din, _BF16_ROW_ALIGN)
            bf16_width = max(bf16_width, _round_up(dout_used, _LANE))
        else:
            off = f32_rows
            f32_rows += _round_up(din, _F32_ROW_ALIGN)
            f32_width = max(f32_width, _round_up(dout_used, _LANE))
        bias_width = max(bias_width, _round_up(dout_used, _LANE))
        infos.append((path, off, din, dout, dout_used, bool(relu)))

    f32_rows = max(_F32_ROW_ALIGN, _round_up(f32_rows, _F32_ROW_ALIGN))
    bf16_rows = max(_BF16_ROW_ALIGN, _round_up(bf16_rows, _BF16_ROW_ALIGN))

    w_f32 = np.zeros((f32_rows, f32_width), np.float32)
    w_bf16 = np.zeros((bf16_rows, bf16_width), np.float32)
    b_f32 = np.zeros((_round_up(n, 8), bias_width), np.float32)

    meta = []
    for i, ((w, b, relu), (path, off, din, dout, dout_used, _)) in enumerate(
            zip(eff_layers, infos)):
        if path == "mxu_bf16":
            w_bf16[off:off + din, :dout] = w
        else:
            w_f32[off:off + din, :dout] = w
        b_f32[i, :dout] = b
        meta.append((path, i, off, din, dout_used, bool(relu)))

    return (jnp.asarray(w_f32, jnp.float32),
            jnp.asarray(w_bf16, jnp.bfloat16),
            jnp.asarray(b_f32, jnp.float32),
            tuple(meta))


def mlp_kernel(x_ref, wf_ref, wb_ref, b_ref, o_ref, *, layer_meta, act_dtype):
    """Whole MLP on one batch tile. All parameter slabs are VMEM-resident."""
    h = x_ref[...].astype(jnp.float32)                        # [TB, in0]
    for (path, brow, off, din, dout, relu) in layer_meta:
        bias = b_ref[brow:brow + 1, 0:dout]                   # f32 [1, dout]
        if path == "mxu_bf16":
            w = wb_ref[off:off + din, 0:dout]                 # bf16
            h = jnp.dot(h.astype(jnp.bfloat16), w,
                        preferred_element_type=jnp.float32) + bias
        elif path == "mxu_f32":
            # Composed contraction chain: f32 weight, lane-dense padded output.
            w = wf_ref[off:off + din, 0:dout]                 # f32 [din, 128]
            h = jnp.dot(h.astype(jnp.float32), w,
                        preferred_element_type=jnp.float32) + bias
        else:  # "vpu": tiny-K layer -> unrolled broadcast-MACs, no MXU round trip
            w = wf_ref[off:off + din, 0:dout]                 # f32
            hf = h.astype(jnp.float32)
            # TODO(synk): the per-k lane-extract of hf[:, k] still costs a lane
            # broadcast; a pure-VALU sublane formulation needs a transposed
            # activation layout for these layers.
            acc = hf[:, 0:1] * w[0:1, :]
            for k in range(1, din):
                acc = acc + hf[:, k:k + 1] * w[k:k + 1, :]
            h = acc + bias
        if relu:
            h = jnp.maximum(h, 0.0)
        if path == "mxu_bf16":
            h = h.astype(act_dtype)   # carry bf16 between big layers (v6e/v7x)
    o_ref[...] = h.astype(o_ref.dtype)


def _device_kind():
    try:
        return jax.devices()[0].device_kind
    except Exception:
        return ""


def _choose_batch_tile(batch, device_kind=""):
    kind = device_kind.lower()
    v5e = ("v5 lite" in kind) or ("v5e" in kind) or ("v5lite" in kind)
    tb_max = 128 if v5e else 256          # match MXU M-dim: 128 (v5e) / 256 (v6e, v7x)
    two_core = any(t in kind for t in ("v4", "v5p", "v7", "7x"))
    n_steps = max(1, -(-batch // tb_max))
    if two_core and batch > 64 and n_steps % 2 == 1:
        n_steps += 1                      # even grid -> both TensorCores get equal work
    return _round_up(-(-batch // n_steps), 8)


def _act_dtype(device_kind=""):
    kind = device_kind.lower()
    v5e = ("v5 lite" in kind) or ("v5e" in kind) or ("v5lite" in kind)
    return jnp.float32 if v5e else jnp.bfloat16   # v5e has no bf16 VPU


def unsqueeze_forward(x, w_f32, w_bf16, b_f32, layer_meta, *, num_classes):
    """x: [B, num_features] f32. Returns [B, num_classes]."""
    B, in_dim = x.shape
    out_pad = layer_meta[-1][4]           # lane-dense padded width of final layer

    kind = _device_kind()
    TB = _choose_batch_tile(B, kind)
    act_dtype = _act_dtype(kind)

    Bp = _round_up(B, TB)
    if Bp != B:
        x = jnp.pad(x, ((0, Bp - B), (0, 0)))
    grid = (Bp // TB,)

    flops = 2 * Bp * sum(din * dout for (_, _, _, din, dout, _) in layer_meta)
    bytes_accessed = (w_f32.size * w_f32.dtype.itemsize
                      + w_bf16.size * w_bf16.dtype.itemsize
                      + b_f32.size * b_f32.dtype.itemsize
                      + x.size * x.dtype.itemsize
                      + Bp * out_pad * x.dtype.itemsize)

    kernel = functools.partial(mlp_kernel, layer_meta=layer_meta, act_dtype=act_dtype)
    out = pl.pallas_call(
        kernel,
        out_shape=jax.ShapeDtypeStruct((Bp, out_pad), x.dtype),
        grid=grid,
        in_specs=[
            pl.BlockSpec((TB, in_dim), lambda i: (i, 0)),
            pl.BlockSpec(w_f32.shape, lambda i: (0, 0)),    # resident f32 weight slab
            pl.BlockSpec(w_bf16.shape, lambda i: (0, 0)),   # resident bf16 weight slab
            pl.BlockSpec(b_f32.shape, lambda i: (0, 0)),    # resident bias slab
        ],
        out_specs=pl.BlockSpec((TB, out_pad), lambda i: (i, 0)),
        compiler_params=pltpu.CompilerParams(
            dimension_semantics=("parallel",)),
        cost_estimate=pl.CostEstimate(
            flops=flops, transcendentals=0, bytes_accessed=bytes_accessed),
    )(x, w_f32, w_bf16, b_f32)
    return out[:B, :num_classes]


def reference_forward_f32(x, weights, biases, relu_flags):
    """Original, un-composed full-f32 forward (module semantics)."""
    h = x
    for w, b, r in zip(weights, biases, relu_flags):
        h = h @ w + b
        if r:
            h = jnp.maximum(h, 0.0)
    return h


def reference_forward_mirror(x, eff_layers, act_dtype, vpu_max_k=_VPU_MAX_K):
    """Pure-JAX mirror of the kernel's dtype policy (VPU f32, big layers bf16,
    composed final layer f32, bf16-carried activations)."""
    h = x.astype(jnp.float32)
    for (w, b, relu) in eff_layers:
        din = w.shape[0]
        bj = jnp.asarray(b, jnp.float32)
        if din <= vpu_max_k:                      # VPU path: full f32
            h = jnp.dot(h.astype(jnp.float32), jnp.asarray(w, jnp.float32),
                        precision=jax.lax.Precision.HIGHEST) + bj
        elif relu:                                # big MXU layers: bf16 x bf16 -> f32
            h = jnp.dot(h.astype(jnp.bfloat16), jnp.asarray(w, jnp.bfloat16),
                        preferred_element_type=jnp.float32) + bj
        else:                                     # composed final layer: f32 weight
            h = jnp.dot(h.astype(jnp.float32), jnp.asarray(w, jnp.float32),
                        precision=jax.lax.Precision.HIGHEST) + bj
        if relu:
            h = jnp.maximum(h, 0.0)
            if din > vpu_max_k:
                h = h.astype(act_dtype)
    return h.astype(jnp.float32)


if __name__ == "__main__":
    layer_cfg = build_layer_config(num_features=2, num_classes=2,
                                   max_throughput_multiplier=256)
    relu_flags = [r for (_, _, r) in layer_cfg]
    num_classes = layer_cfg[-1][1]             # 2

    key = jax.random.PRNGKey(0)
    key, kx, kp = jax.random.split(key, 3)

    batch = 8
    num_features = layer_cfg[0][0]             # 2
    x = jax.random.normal(kx, (batch, num_features), jnp.float32)

    weights, biases = init_params(layer_cfg, kp)
    eff_layers = make_effective_layers(weights, biases, relu_flags)
    w_f32, w_bf16, b_f32, layer_meta = pack_params(eff_layers)

    out = unsqueeze_forward(x, w_f32, w_bf16, b_f32, layer_meta,
                            num_classes=num_classes)
    out = jax.block_until_ready(out)
    assert out.shape == (batch, num_classes)

    # Mirror of the kernel's exact dtype policy.
    ref_mirror = reference_forward_mirror(x, eff_layers, _act_dtype(_device_kind()))
    assert jnp.allclose(out, ref_mirror, atol=2e-2, rtol=2e-2), \
        "Pallas output mismatch vs dtype-mirrored JAX reference"

    # Loose check: still close to the original full-f32, un-composed module.
    ref_f32 = reference_forward_f32(x, weights, biases, relu_flags)
    assert jnp.allclose(out, ref_f32, atol=5e-2, rtol=5e-2), \
        "Pallas output deviates too far from f32 reference"

    print("KERNEL_OK")
</pallas_src>

<mosaic_0001>
module attributes {stable_mosaic.version = 11 : i64} {
  func.func @mlp_kernel(%arg0: i32, %arg1: memref<8x2xf32, #tpu.memory_space<vmem>>, %arg2: memref<584x128xf32, #tpu.memory_space<vmem>>, %arg3: memref<448x512xbf16, #tpu.memory_space<vmem>>, %arg4: memref<16x512xf32, #tpu.memory_space<vmem>>, %arg5: memref<8x128xf32, #tpu.memory_space<vmem>>) attributes {dimension_semantics = [#tpu.dimension_semantics<parallel>], iteration_bounds = array<i64: 1>, scalar_prefetch = 0 : i64, scratch_operands = 0 : i64, tpu.core_type = #tpu.core_type<tc>, window_params = [{transform_indices = @transform_0, window_bounds = array<i64: 8, 2>}, {pipeline_mode = #tpu.pipeline_mode<synchronous>, transform_indices = @transform_1, window_bounds = array<i64: 584, 128>}, {pipeline_mode = #tpu.pipeline_mode<synchronous>, transform_indices = @transform_2, window_bounds = array<i64: 448, 512>}, {pipeline_mode = #tpu.pipeline_mode<synchronous>, transform_indices = @transform_3, window_bounds = array<i64: 16, 512>}, {transform_indices = @transform_4, window_bounds = array<i64: 8, 128>}]} {
    %c0 = arith.constant 0 : index
    %c0_0 = arith.constant 0 : index
    %0 = vector.load %arg1[%c0, %c0_0] : memref<8x2xf32, #tpu.memory_space<vmem>>, vector<8x2xf32>
    %c0_1 = arith.constant 0 : index
    %c0_2 = arith.constant 0 : index
    %1 = vector.load %arg4[%c0_1, %c0_2] : memref<16x512xf32, #tpu.memory_space<vmem>>, vector<1x4xf32>
    %c0_3 = arith.constant 0 : index
    %c0_4 = arith.constant 0 : index
    %2 = vector.load %arg2[%c0_3, %c0_4] : memref<584x128xf32, #tpu.memory_space<vmem>>, vector<2x4xf32>
    %3 = vector.extract_strided_slice %0 {offsets = [0, 0], sizes = [8, 1], strides = [1, 1]} : vector<8x2xf32> to vector<8x1xf32>
    %4 = vector.extract_strided_slice %2 {offsets = [0, 0], sizes = [1, 4], strides = [1, 1]} : vector<2x4xf32> to vector<1x4xf32>
    %5 = vector.broadcast %3 : vector<8x1xf32> to vector<8x4xf32>
    %6 = vector.broadcast %4 : vector<1x4xf32> to vector<8x4xf32>
    %7 = arith.mulf %5, %6 : vector<8x4xf32>
    %8 = vector.extract_strided_slice %0 {offsets = [0, 1], sizes = [8, 1], strides = [1, 1]} : vector<8x2xf32> to vector<8x1xf32>
    %9 = vector.extract_strided_slice %2 {offsets = [1, 0], sizes = [1, 4], strides = [1, 1]} : vector<2x4xf32> to vector<1x4xf32>
    %10 = vector.broadcast %8 : vector<8x1xf32> to vector<8x4xf32>
    %11 = vector.broadcast %9 : vector<1x4xf32> to vector<8x4xf32>
    %12 = arith.mulf %10, %11 : vector<8x4xf32>
    %13 = arith.addf %7, %12 : vector<8x4xf32>
    %14 = vector.broadcast %1 : vector<1x4xf32> to vector<8x4xf32>
    %15 = arith.addf %13, %14 : vector<8x4xf32>
    %cst = arith.constant 0.000000e+00 : f32
    %16 = vector.broadcast %cst : f32 to vector<8x4xf32>
    %17 = arith.maximumf %15, %16 : vector<8x4xf32>
    %c1 = arith.constant 1 : index
    %c0_5 = arith.constant 0 : index
    %18 = vector.load %arg4[%c1, %c0_5] : memref<16x512xf32, #tpu.memory_space<vmem>>, vector<1x8xf32>
    %c8 = arith.constant 8 : index
    %c0_6 = arith.constant 0 : index
    %19 = vector.load %arg2[%c8, %c0_6] : memref<584x128xf32, #tpu.memory_space<vmem>>, vector<4x8xf32>
    %20 = vector.extract_strided_slice %17 {offsets = [0, 0], sizes = [8, 1], strides = [1, 1]} : vector<8x4xf32> to vector<8x1xf32>
    %21 = vector.extract_strided_slice %19 {offsets = [0, 0], sizes = [1, 8], strides = [1, 1]} : vector<4x8xf32> to vector<1x8xf32>
    %22 = vector.broadcast %20 : vector<8x1xf32> to vector<8x8xf32>
    %23 = vector.broadcast %21 : vector<1x8xf32> to vector<8x8xf32>
    %24 = arith.mulf %22, %23 : vector<8x8xf32>
    %25 = vector.extract_strided_slice %17 {offsets = [0, 1], sizes = [8, 1], strides = [1, 1]} : vector<8x4xf32> to vector<8x1xf32>
    %26 = vector.extract_strided_slice %19 {offsets = [1, 0], sizes = [1, 8], strides = [1, 1]} : vector<4x8xf32> to vector<1x8xf32>
    %27 = vector.broadcast %25 : vector<8x1xf32> to vector<8x8xf32>
    %28 = vector.broadcast %26 : vector<1x8xf32> to vector<8x8xf32>
    %29 = arith.mulf %27, %28 : vector<8x8xf32>
    %30 = arith.addf %24, %29 : vector<8x8xf32>
    %31 = vector.extract_strided_slice %17 {offsets = [0, 2], sizes = [8, 1], strides = [1, 1]} : vector<8x4xf32> to vector<8x1xf32>
    %32 = vector.extract_strided_slice %19 {offsets = [2, 0], sizes = [1, 8], strides = [1, 1]} : vector<4x8xf32> to vector<1x8xf32>
    %33 = vector.broadcast %31 : vector<8x1xf32> to vector<8x8xf32>
    %34 = vector.broadcast %32 : vector<1x8xf32> to vector<8x8xf32>
    %35 = arith.mulf %33, %34 : vector<8x8xf32>
    %36 = arith.addf %30, %35 : vector<8x8xf32>
    %37 = vector.extract_strided_slice %17 {offsets = [0, 3], sizes = [8, 1], strides = [1, 1]} : vector<8x4xf32> to vector<8x1xf32>
    %38 = vector.extract_strided_slice %19 {offsets = [3, 0], sizes = [1, 8], strides = [1, 1]} : vector<4x8xf32> to vector<1x8xf32>
    %39 = vector.broadcast %37 : vector<8x1xf32> to vector<8x8xf32>
    %40 = vector.broadcast %38 : vector<1x8xf32> to vector<8x8xf32>
    %41 = arith.mulf %39, %40 : vector<8x8xf32>
    %42 = arith.addf %36, %41 : vector<8x8xf32>
    %43 = vector.broadcast %18 : vector<1x8xf32> to vector<8x8xf32>
    %44 = arith.addf %42, %43 : vector<8x8xf32>
    %cst_7 = arith.constant 0.000000e+00 : f32
    %45 = vector.broadcast %cst_7 : f32 to vector<8x8xf32>
    %46 = arith.maximumf %44, %45 : vector<8x8xf32>
    %c2 = arith.constant 2 : index
    %c0_8 = arith.constant 0 : index
    %47 = vector.load %arg4[%c2, %c0_8] : memref<16x512xf32, #tpu.memory_space<vmem>>, vector<1x16xf32>
    %c16 = arith.constant 16 : index
    %c0_9 = arith.constant 0 : index
    %48 = vector.load %arg2[%c16, %c0_9] : memref<584x128xf32, #tpu.memory_space<vmem>>, vector<8x16xf32>
    %49 = vector.extract_strided_slice %46 {offsets = [0, 0], sizes = [8, 1], strides = [1, 1]} : vector<8x8xf32> to vector<8x1xf32>
    %50 = vector.extract_strided_slice %48 {offsets = [0, 0], sizes = [1, 16], strides = [1, 1]} : vector<8x16xf32> to vector<1x16xf32>
    %51 = vector.broadcast %49 : vector<8x1xf32> to vector<8x16xf32>
    %52 = vector.broadcast %50 : vector<1x16xf32> to vector<8x16xf32>
    %53 = arith.mulf %51, %52 : vector<8x16xf32>
    %54 = vector.extract_strided_slice %46 {offsets = [0, 1], sizes = [8, 1], strides = [1, 1]} : vector<8x8xf32> to vector<8x1xf32>
    %55 = vector.extract_strided_slice %48 {offsets = [1, 0], sizes = [1, 16], strides = [1, 1]} : vector<8x16xf32> to vector<1x16xf32>
    %56 = vector.broadcast %54 : vector<8x1xf32> to vector<8x16xf32>
    %57 = vector.broadcast %55 : vector<1x16xf32> to vector<8x16xf32>
    %58 = arith.mulf %56, %57 : vector<8x16xf32>
    %59 = arith.addf %53, %58 : vector<8x16xf32>
    %60 = vector.extract_strided_slice %46 {offsets = [0, 2], sizes = [8, 1], strides = [1, 1]} : vector<8x8xf32> to vector<8x1xf32>
    %61 = vector.extract_strided_slice %48 {offsets = [2, 0], sizes = [1, 16], strides = [1, 1]} : vector<8x16xf32> to vector<1x16xf32>
    %62 = vector.broadcast %60 : vector<8x1xf32> to vector<8x16xf32>
    %63 = vector.broadcast %61 : vector<1x16xf32> to vector<8x16xf32>
    %64 = arith.mulf %62, %63 : vector<8x16xf32>
    %65 = arith.addf %59, %64 : vector<8x16xf32>
    %66 = vector.extract_strided_slice %46 {offsets = [0, 3], sizes = [8, 1], strides = [1, 1]} : vector<8x8xf32> to vector<8x1xf32>
    %67 = vector.extract_strided_slice %48 {offsets = [3, 0], sizes = [1, 16], strides = [1, 1]} : vector<8x16xf32> to vector<1x16xf32>
    %68 = vector.broadcast %66 : vector<8x1xf32> to vector<8x16xf32>
    %69 = vector.broadcast %67 : vector<1x16xf32> to vector<8x16xf32>
    %70 = arith.mulf %68, %69 : vector<8x16xf32>
    %71 = arith.addf %65, %70 : vector<8x16xf32>
    %72 = vector.extract_strided_slice %46 {offsets = [0, 4], sizes = [8, 1], strides = [1, 1]} : vector<8x8xf32> to vector<8x1xf32>
    %73 = vector.extract_strided_slice %48 {offsets = [4, 0], sizes = [1, 16], strides = [1, 1]} : vector<8x16xf32> to vector<1x16xf32>
    %74 = vector.broadcast %72 : vector<8x1xf32> to vector<8x16xf32>
    %75 = vector.broadcast %73 : vector<1x16xf32> to vector<8x16xf32>
    %76 = arith.mulf %74, %75 : vector<8x16xf32>
    %77 = arith.addf %71, %76 : vector<8x16xf32>
    %78 = vector.extract_strided_slice %46 {offsets = [0, 5], sizes = [8, 1], strides = [1, 1]} : vector<8x8xf32> to vector<8x1xf32>
    %79 = vector.extract_strided_slice %48 {offsets = [5, 0], sizes = [1, 16], strides = [1, 1]} : vector<8x16xf32> to vector<1x16xf32>
    %80 = vector.broadcast %78 : vector<8x1xf32> to vector<8x16xf32>
    %81 = vector.broadcast %79 : vector<1x16xf32> to vector<8x16xf32>
    %82 = arith.mulf %80, %81 : vector<8x16xf32>
    %83 = arith.addf %77, %82 : vector<8x16xf32>
    %84 = vector.extract_strided_slice %46 {offsets = [0, 6], sizes = [8, 1], strides = [1, 1]} : vector<8x8xf32> to vector<8x1xf32>
    %85 = vector.extract_strided_slice %48 {offsets = [6, 0], sizes = [1, 16], strides = [1, 1]} : vector<8x16xf32> to vector<1x16xf32>
    %86 = vector.broadcast %84 : vector<8x1xf32> to vector<8x16xf32>
    %87 = vector.broadcast %85 : vector<1x16xf32> to vector<8x16xf32>
    %88 = arith.mulf %86, %87 : vector<8x16xf32>
    %89 = arith.addf %83, %88 : vector<8x16xf32>
    %90 = vector.extract_strided_slice %46 {offsets = [0, 7], sizes = [8, 1], strides = [1, 1]} : vector<8x8xf32> to vector<8x1xf32>
    %91 = vector.extract_strided_slice %48 {offsets = [7, 0], sizes = [1, 16], strides = [1, 1]} : vector<8x16xf32> to vector<1x16xf32>
    %92 = vector.broadcast %90 : vector<8x1xf32> to vector<8x16xf32>
    %93 = vector.broadcast %91 : vector<1x16xf32> to vector<8x16xf32>
    %94 = arith.mulf %92, %93 : vector<8x16xf32>
    %95 = arith.addf %89, %94 : vector<8x16xf32>
    %96 = vector.broadcast %47 : vector<1x16xf32> to vector<8x16xf32>
    %97 = arith.addf %95, %96 : vector<8x16xf32>
    %cst_10 = arith.constant 0.000000e+00 : f32
    %98 = vector.broadcast %cst_10 : f32 to vector<8x16xf32>
    %99 = arith.maximumf %97, %98 : vector<8x16xf32>
    %c3 = arith.constant 3 : index
    %c0_11 = arith.constant 0 : index
    %100 = vector.load %arg4[%c3, %c0_11] : memref<16x512xf32, #tpu.memory_space<vmem>>, vector<1x32xf32>
    %c24 = arith.constant 24 : index
    %c0_12 = arith.constant 0 : index
    %101 = vector.load %arg2[%c24, %c0_12] : memref<584x128xf32, #tpu.memory_space<vmem>>, vector<16x32xf32>
    %102 = vector.extract_strided_slice %99 {offsets = [0, 0], sizes = [8, 1], strides = [1, 1]} : vector<8x16xf32> to vector<8x1xf32>
    %103 = vector.extract_strided_slice %101 {offsets = [0, 0], sizes = [1, 32], strides = [1, 1]} : vector<16x32xf32> to vector<1x32xf32>
    %104 = vector.broadcast %102 : vector<8x1xf32> to vector<8x32xf32>
    %105 = vector.broadcast %103 : vector<1x32xf32> to vector<8x32xf32>
    %106 = arith.mulf %104, %105 : vector<8x32xf32>
    %107 = vector.extract_strided_slice %99 {offsets = [0, 1], sizes = [8, 1], strides = [1, 1]} : vector<8x16xf32> to vector<8x1xf32>
    %108 = vector.extract_strided_slice %101 {offsets = [1, 0], sizes = [1, 32], strides = [1, 1]} : vector<16x32xf32> to vector<1x32xf32>
    %109 = vector.broadcast %107 : vector<8x1xf32> to vector<8x32xf32>
    %110 = vector.broadcast %108 : vector<1x32xf32> to vector<8x32xf32>
    %111 = arith.mulf %109, %110 : vector<8x32xf32>
    %112 = arith.addf %106, %111 : vector<8x32xf32>
    %113 = vector.extract_strided_slice %99 {offsets = [0, 2], sizes = [8, 1], strides = [1, 1]} : vector<8x16xf32> to vector<8x1xf32>
    %114 = vector.extract_strided_slice %101 {offsets = [2, 0], sizes = [1, 32], strides = [1, 1]} : vector<16x32xf32> to vector<1x32xf32>
    %115 = vector.broadcast %113 : vector<8x1xf32> to vector<8x32xf32>
    %116 = vector.broadcast %114 : vector<1x32xf32> to vector<8x32xf32>
    %117 = arith.mulf %115, %116 : vector<8x32xf32>
    %118 = arith.addf %112, %117 : vector<8x32xf32>
    %119 = vector.extract_strided_slice %99 {offsets = [0, 3], sizes = [8, 1], strides = [1, 1]} : vector<8x16xf32> to vector<8x1xf32>
    %120 = vector.extract_strided_slice %101 {offsets = [3, 0], sizes = [1, 32], strides = [1, 1]} : vector<16x32xf32> to vector<1x32xf32>
    %121 = vector.broadcast %119 : vector<8x1xf32> to vector<8x32xf32>
    %122 = vector.broadcast %120 : vector<1x32xf32> to vector<8x32xf32>
    %123 = arith.mulf %121, %122 : vector<8x32xf32>
    %124 = arith.addf %118, %123 : vector<8x32xf32>
    %125 = vector.extract_strided_slice %99 {offsets = [0, 4], sizes = [8, 1], strides = [1, 1]} : vector<8x16xf32> to vector<8x1xf32>
    %126 = vector.extract_strided_slice %101 {offsets = [4, 0], sizes = [1, 32], strides = [1, 1]} : vector<16x32xf32> to vector<1x32xf32>
    %127 = vector.broadcast %125 : vector<8x1xf32> to vector<8x32xf32>
    %128 = vector.broadcast %126 : vector<1x32xf32> to vector<8x32xf32>
    %129 = arith.mulf %127, %128 : vector<8x32xf32>
    %130 = arith.addf %124, %129 : vector<8x32xf32>
    %131 = vector.extract_strided_slice %99 {offsets = [0, 5], sizes = [8, 1], strides = [1, 1]} : vector<8x16xf32> to vector<8x1xf32>
    %132 = vector.extract_strided_slice %101 {offsets = [5, 0], sizes = [1, 32], strides = [1, 1]} : vector<16x32xf32> to vector<1x32xf32>
    %133 = vector.broadcast %131 : vector<8x1xf32> to vector<8x32xf32>
    %134 = vector.broadcast %132 : vector<1x32xf32> to vector<8x32xf32>
    %135 = arith.mulf %133, %134 : vector<8x32xf32>
    %136 = arith.addf %130, %135 : vector<8x32xf32>
    %137 = vector.extract_strided_slice %99 {offsets = [0, 6], sizes = [8, 1], strides = [1, 1]} : vector<8x16xf32> to vector<8x1xf32>
    %138 = vector.extract_strided_slice %101 {offsets = [6, 0], sizes = [1, 32], strides = [1, 1]} : vector<16x32xf32> to vector<1x32xf32>
    %139 = vector.broadcast %137 : vector<8x1xf32> to vector<8x32xf32>
    %140 = vector.broadcast %138 : vector<1x32xf32> to vector<8x32xf32>
    %141 = arith.mulf %139, %140 : vector<8x32xf32>
    %142 = arith.addf %136, %141 : vector<8x32xf32>
    %143 = vector.extract_strided_slice %99 {offsets = [0, 7], sizes = [8, 1], strides = [1, 1]} : vector<8x16xf32> to vector<8x1xf32>
    %144 = vector.extract_strided_slice %101 {offsets = [7, 0], sizes = [1, 32], strides = [1, 1]} : vector<16x32xf32> to vector<1x32xf32>
    %145 = vector.broadcast %143 : vector<8x1xf32> to vector<8x32xf32>
    %146 = vector.broadcast %144 : vector<1x32xf32> to vector<8x32xf32>
    %147 = arith.mulf %145, %146 : vector<8x32xf32>
    %148 = arith.addf %142, %147 : vector<8x32xf32>
    %149 = vector.extract_strided_slice %99 {offsets = [0, 8], sizes = [8, 1], strides = [1, 1]} : vector<8x16xf32> to vector<8x1xf32>
    %150 = vector.extract_strided_slice %101 {offsets = [8, 0], sizes = [1, 32], strides = [1, 1]} : vector<16x32xf32> to vector<1x32xf32>
    %151 = vector.broadcast %149 : vector<8x1xf32> to vector<8x32xf32>
    %152 = vector.broadcast %150 : vector<1x32xf32> to vector<8x32xf32>
    %153 = arith.mulf %151, %152 : vector<8x32xf32>
    %154 = arith.addf %148, %153 : vector<8x32xf32>
    %155 = vector.extract_strided_slice %99 {offsets = [0, 9], sizes = [8, 1], strides = [1, 1]} : vector<8x16xf32> to vector<8x1xf32>
    %156 = vector.extract_strided_slice %101 {offsets = [9, 0], sizes = [1, 32], strides = [1, 1]} : vector<16x32xf32> to vector<1x32xf32>
    %157 = vector.broadcast %155 : vector<8x1xf32> to vector<8x32xf32>
    %158 = vector.broadcast %156 : vector<1x32xf32> to vector<8x32xf32>
    %159 = arith.mulf %157, %158 : vector<8x32xf32>
    %160 = arith.addf %154, %159 : vector<8x32xf32>
    %161 = vector.extract_strided_slice %99 {offsets = [0, 10], sizes = [8, 1], strides = [1, 1]} : vector<8x16xf32> to vector<8x1xf32>
    %162 = vector.extract_strided_slice %101 {offsets = [10, 0], sizes = [1, 32], strides = [1, 1]} : vector<16x32xf32> to vector<1x32xf32>
    %163 = vector.broadcast %161 : vector<8x1xf32> to vector<8x32xf32>
    %164 = vector.broadcast %162 : vector<1x32xf32> to vector<8x32xf32>
    %165 = arith.mulf %163, %164 : vector<8x32xf32>
    %166 = arith.addf %160, %165 : vector<8x32xf32>
    %167 = vector.extract_strided_slice %99 {offsets = [0, 11], sizes = [8, 1], strides = [1, 1]} : vector<8x16xf32> to vector<8x1xf32>
    %168 = vector.extract_strided_slice %101 {offsets = [11, 0], sizes = [1, 32], strides = [1, 1]} : vector<16x32xf32> to vector<1x32xf32>
    %169 = vector.broadcast %167 : vector<8x1xf32> to vector<8x32xf32>
    %170 = vector.broadcast %168 : vector<1x32xf32> to vector<8x32xf32>
    %171 = arith.mulf %169, %170 : vector<8x32xf32>
    %172 = arith.addf %166, %171 : vector<8x32xf32>
    %173 = vector.extract_strided_slice %99 {offsets = [0, 12], sizes = [8, 1], strides = [1, 1]} : vector<8x16xf32> to vector<8x1xf32>
    %174 = vector.extract_strided_slice %101 {offsets = [12, 0], sizes = [1, 32], strides = [1, 1]} : vector<16x32xf32> to vector<1x32xf32>
    %175 = vector.broadcast %173 : vector<8x1xf32> to vector<8x32xf32>
    %176 = vector.broadcast %174 : vector<1x32xf32> to vector<8x32xf32>
    %177 = arith.mulf %175, %176 : vector<8x32xf32>
    %178 = arith.addf %172, %177 : vector<8x32xf32>
    %179 = vector.extract_strided_slice %99 {offsets = [0, 13], sizes = [8, 1], strides = [1, 1]} : vector<8x16xf32> to vector<8x1xf32>
    %180 = vector.extract_strided_slice %101 {offsets = [13, 0], sizes = [1, 32], strides = [1, 1]} : vector<16x32xf32> to vector<1x32xf32>
    %181 = vector.broadcast %179 : vector<8x1xf32> to vector<8x32xf32>
    %182 = vector.broadcast %180 : vector<1x32xf32> to vector<8x32xf32>
    %183 = arith.mulf %181, %182 : vector<8x32xf32>
    %184 = arith.addf %178, %183 : vector<8x32xf32>
    %185 = vector.extract_strided_slice %99 {offsets = [0, 14], sizes = [8, 1], strides = [1, 1]} : vector<8x16xf32> to vector<8x1xf32>
    %186 = vector.extract_strided_slice %101 {offsets = [14, 0], sizes = [1, 32], strides = [1, 1]} : vector<16x32xf32> to vector<1x32xf32>
    %187 = vector.broadcast %185 : vector<8x1xf32> to vector<8x32xf32>
    %188 = vector.broadcast %186 : vector<1x32xf32> to vector<8x32xf32>
    %189 = arith.mulf %187, %188 : vector<8x32xf32>
    %190 = arith.addf %184, %189 : vector<8x32xf32>
    %191 = vector.extract_strided_slice %99 {offsets = [0, 15], sizes = [8, 1], strides = [1, 1]} : vector<8x16xf32> to vector<8x1xf32>
    %192 = vector.extract_strided_slice %101 {offsets = [15, 0], sizes = [1, 32], strides = [1, 1]} : vector<16x32xf32> to vector<1x32xf32>
    %193 = vector.broadcast %191 : vector<8x1xf32> to vector<8x32xf32>
    %194 = vector.broadcast %192 : vector<1x32xf32> to vector<8x32xf32>
    %195 = arith.mulf %193, %194 : vector<8x32xf32>
    %196 = arith.addf %190, %195 : vector<8x32xf32>
    %197 = vector.broadcast %100 : vector<1x32xf32> to vector<8x32xf32>
    %198 = arith.addf %196, %197 : vector<8x32xf32>
    %cst_13 = arith.constant 0.000000e+00 : f32
    %199 = vector.broadcast %cst_13 : f32 to vector<8x32xf32>
    %200 = arith.maximumf %198, %199 : vector<8x32xf32>
    %c4 = arith.constant 4 : index
    %c0_14 = arith.constant 0 : index
    %201 = vector.load %arg4[%c4, %c0_14] : memref<16x512xf32, #tpu.memory_space<vmem>>, vector<1x64xf32>
    %c40 = arith.constant 40 : index
    %c0_15 = arith.constant 0 : index
    %202 = vector.load %arg2[%c40, %c0_15] : memref<584x128xf32, #tpu.memory_space<vmem>>, vector<32x64xf32>
    %203 = vector.extract_strided_slice %200 {offsets = [0, 0], sizes = [8, 1], strides = [1, 1]} : vector<8x32xf32> to vector<8x1xf32>
    %204 = vector.extract_strided_slice %202 {offsets = [0, 0], sizes = [1, 64], strides = [1, 1]} : vector<32x64xf32> to vector<1x64xf32>
    %205 = vector.broadcast %203 : vector<8x1xf32> to vector<8x64xf32>
    %206 = vector.broadcast %204 : vector<1x64xf32> to vector<8x64xf32>
    %207 = arith.mulf %205, %206 : vector<8x64xf32>
    %208 = vector.extract_strided_slice %200 {offsets = [0, 1], sizes = [8, 1], strides = [1, 1]} : vector<8x32xf32> to vector<8x1xf32>
    %209 = vector.extract_strided_slice %202 {offsets = [1, 0], sizes = [1, 64], strides = [1, 1]} : vector<32x64xf32> to vector<1x64xf32>
    %210 = vector.broadcast %208 : vector<8x1xf32> to vector<8x64xf32>
    %211 = vector.broadcast %209 : vector<1x64xf32> to vector<8x64xf32>
    %212 = arith.mulf %210, %211 : vector<8x64xf32>
    %213 = arith.addf %207, %212 : vector<8x64xf32>
    %214 = vector.extract_strided_slice %200 {offsets = [0, 2], sizes = [8, 1], strides = [1, 1]} : vector<8x32xf32> to vector<8x1xf32>
    %215 = vector.extract_strided_slice %202 {offsets = [2, 0], sizes = [1, 64], strides = [1, 1]} : vector<32x64xf32> to vector<1x64xf32>
    %216 = vector.broadcast %214 : vector<8x1xf32> to vector<8x64xf32>
    %217 = vector.broadcast %215 : vector<1x64xf32> to vector<8x64xf32>
    %218 = arith.mulf %216, %217 : vector<8x64xf32>
    %219 = arith.addf %213, %218 : vector<8x64xf32>
    %220 = vector.extract_strided_slice %200 {offsets = [0, 3], sizes = [8, 1], strides = [1, 1]} : vector<8x32xf32> to vector<8x1xf32>
    %221 = vector.extract_strided_slice %202 {offsets = [3, 0], sizes = [1, 64], strides = [1, 1]} : vector<32x64xf32> to vector<1x64xf32>
    %222 = vector.broadcast %220 : vector<8x1xf32> to vector<8x64xf32>
    %223 = vector.broadcast %221 : vector<1x64xf32> to vector<8x64xf32>
    %224 = arith.mulf %222, %223 : vector<8x64xf32>
    %225 = arith.addf %219, %224 : vector<8x64xf32>
    %226 = vector.extract_strided_slice %200 {offsets = [0, 4], sizes = [8, 1], strides = [1, 1]} : vector<8x32xf32> to vector<8x1xf32>
    %227 = vector.extract_strided_slice %202 {offsets = [4, 0], sizes = [1, 64], strides = [1, 1]} : vector<32x64xf32> to vector<1x64xf32>
    %228 = vector.broadcast %226 : vector<8x1xf32> to vector<8x64xf32>
    %229 = vector.broadcast %227 : vector<1x64xf32> to vector<8x64xf32>
    %230 = arith.mulf %228, %229 : vector<8x64xf32>
    %231 = arith.addf %225, %230 : vector<8x64xf32>
    %232 = vector.extract_strided_slice %200 {offsets = [0, 5], sizes = [8, 1], strides = [1, 1]} : vector<8x32xf32> to vector<8x1xf32>
    %233 = vector.extract_strided_slice %202 {offsets = [5, 0], sizes = [1, 64], strides = [1, 1]} : vector<32x64xf32> to vector<1x64xf32>
    %234 = vector.broadcast %232 : vector<8x1xf32> to vector<8x64xf32>
    %235 = vector.broadcast %233 : vector<1x64xf32> to vector<8x64xf32>
    %236 = arith.mulf %234, %235 : vector<8x64xf32>
    %237 = arith.addf %231, %236 : vector<8x64xf32>
    %238 = vector.extract_strided_slice %200 {offsets = [0, 6], sizes = [8, 1], strides = [1, 1]} : vector<8x32xf32> to vector<8x1xf32>
    %239 = vector.extract_strided_slice %202 {offsets = [6, 0], sizes = [1, 64], strides = [1, 1]} : vector<32x64xf32> to vector<1x64xf32>
    %240 = vector.broadcast %238 : vector<8x1xf32> to vector<8x64xf32>
    %241 = vector.broadcast %239 : vector<1x64xf32> to vector<8x64xf32>
    %242 = arith.mulf %240, %241 : vector<8x64xf32>
    %243 = arith.addf %237, %242 : vector<8x64xf32>
    %244 = vector.extract_strided_slice %200 {offsets = [0, 7], sizes = [8, 1], strides = [1, 1]} : vector<8x32xf32> to vector<8x1xf32>
    %245 = vector.extract_strided_slice %202 {offsets = [7, 0], sizes = [1, 64], strides = [1, 1]} : vector<32x64xf32> to vector<1x64xf32>
    %246 = vector.broadcast %244 : vector<8x1xf32> to vector<8x64xf32>
    %247 = vector.broadcast %245 : vector<1x64xf32> to vector<8x64xf32>
    %248 = arith.mulf %246, %247 : vector<8x64xf32>
    %249 = arith.addf %243, %248 : vector<8x64xf32>
    %250 = vector.extract_strided_slice %200 {offsets = [0, 8], sizes = [8, 1], strides = [1, 1]} : vector<8x32xf32> to vector<8x1xf32>
    %251 = vector.extract_strided_slice %202 {offsets = [8, 0], sizes = [1, 64], strides = [1, 1]} : vector<32x64xf32> to vector<1x64xf32>
    %252 = vector.broadcast %250 : vector<8x1xf32> to vector<8x64xf32>
    %253 = vector.broadcast %251 : vector<1x64xf32> to vector<8x64xf32>
    %254 = arith.mulf %252, %253 : vector<8x64xf32>
    %255 = arith.addf %249, %254 : vector<8x64xf32>
    %256 = vector.extract_strided_slice %200 {offsets = [0, 9], sizes = [8, 1], strides = [1, 1]} : vector<8x32xf32> to vector<8x1xf32>
    %257 = vector.extract_strided_slice %202 {offsets = [9, 0], sizes = [1, 64], strides = [1, 1]} : vector<32x64xf32> to vector<1x64xf32>
    %258 = vector.broadcast %256 : vector<8x1xf32> to vector<8x64xf32>
    %259 = vector.broadcast %257 : vector<1x64xf32> to vector<8x64xf32>
    %260 = arith.mulf %258, %259 : vector<8x64xf32>
    %261 = arith.addf %255, %260 : vector<8x64xf32>
    %262 = vector.extract_strided_slice %200 {offsets = [0, 10], sizes = [8, 1], strides = [1, 1]} : vector<8x32xf32> to vector<8x1xf32>
    %263 = vector.extract_strided_slice %202 {offsets = [10, 0], sizes = [1, 64], strides = [1, 1]} : vector<32x64xf32> to vector<1x64xf32>
    %264 = vector.broadcast %262 : vector<8x1xf32> to vector<8x64xf32>
    %265 = vector.broadcast %263 : vector<1x64xf32> to vector<8x64xf32>
    %266 = arith.mulf %264, %265 : vector<8x64xf32>
    %267 = arith.addf %261, %266 : vector<8x64xf32>
    %268 = vector.extract_strided_slice %200 {offsets = [0, 11], sizes = [8, 1], strides = [1, 1]} : vector<8x32xf32> to vector<8x1xf32>
    %269 = vector.extract_strided_slice %202 {offsets = [11, 0], sizes = [1, 64], strides = [1, 1]} : vector<32x64xf32> to vector<1x64xf32>
    %270 = vector.broadcast %268 : vector<8x1xf32> to vector<8x64xf32>
    %271 = vector.broadcast %269 : vector<1x64xf32> to vector<8x64xf32>
    %272 = arith.mulf %270, %271 : vector<8x64xf32>
    %273 = arith.addf %267, %272 : vector<8x64xf32>
    %274 = vector.extract_strided_slice %200 {offsets = [0, 12], sizes = [8, 1], strides = [1, 1]} : vector<8x32xf32> to vector<8x1xf32>
    %275 = vector.extract_strided_slice %202 {offsets = [12, 0], sizes = [1, 64], strides = [1, 1]} : vector<32x64xf32> to vector<1x64xf32>
    %276 = vector.broadcast %274 : vector<8x1xf32> to vector<8x64xf32>
    %277 = vector.broadcast %275 : vector<1x64xf32> to vector<8x64xf32>
    %278 = arith.mulf %276, %277 : vector<8x64xf32>
    %279 = arith.addf %273, %278 : vector<8x64xf32>
    %280 = vector.extract_strided_slice %200 {offsets = [0, 13], sizes = [8, 1], strides = [1, 1]} : vector<8x32xf32> to vector<8x1xf32>
    %281 = vector.extract_strided_slice %202 {offsets = [13, 0], sizes = [1, 64], strides = [1, 1]} : vector<32x64xf32> to vector<1x64xf32>
    %282 = vector.broadcast %280 : vector<8x1xf32> to vector<8x64xf32>
    %283 = vector.broadcast %281 : vector<1x64xf32> to vector<8x64xf32>
    %284 = arith.mulf %282, %283 : vector<8x64xf32>
    %285 = arith.addf %279, %284 : vector<8x64xf32>
    %286 = vector.extract_strided_slice %200 {offsets = [0, 14], sizes = [8, 1], strides = [1, 1]} : vector<8x32xf32> to vector<8x1xf32>
    %287 = vector.extract_strided_slice %202 {offsets = [14, 0], sizes = [1, 64], strides = [1, 1]} : vector<32x64xf32> to vector<1x64xf32>
    %288 = vector.broadcast %286 : vector<8x1xf32> to vector<8x64xf32>
    %289 = vector.broadcast %287 : vector<1x64xf32> to vector<8x64xf32>
    %290 = arith.mulf %288, %289 : vector<8x64xf32>
    %291 = arith.addf %285, %290 : vector<8x64xf32>
    %292 = vector.extract_strided_slice %200 {offsets = [0, 15], sizes = [8, 1], strides = [1, 1]} : vector<8x32xf32> to vector<8x1xf32>
    %293 = vector.extract_strided_slice %202 {offsets = [15, 0], sizes = [1, 64], strides = [1, 1]} : vector<32x64xf32> to vector<1x64xf32>
    %294 = vector.broadcast %292 : vector<8x1xf32> to vector<8x64xf32>
    %295 = vector.broadcast %293 : vector<1x64xf32> to vector<8x64xf32>
    %296 = arith.mulf %294, %295 : vector<8x64xf32>
    %297 = arith.addf %291, %296 : vector<8x64xf32>
    %298 = vector.extract_strided_slice %200 {offsets = [0, 16], sizes = [8, 1], strides = [1, 1]} : vector<8x32xf32> to vector<8x1xf32>
    %299 = vector.extract_strided_slice %202 {offsets = [16, 0], sizes = [1, 64], strides = [1, 1]} : vector<32x64xf32> to vector<1x64xf32>
    %300 = vector.broadcast %298 : vector<8x1xf32> to vector<8x64xf32>
    %301 = vector.broadcast %299 : vector<1x64xf32> to vector<8x64xf32>
    %302 = arith.mulf %300, %301 : vector<8x64xf32>
    %303 = arith.addf %297, %302 : vector<8x64xf32>
    %304 = vector.extract_strided_slice %200 {offsets = [0, 17], sizes = [8, 1], strides = [1, 1]} : vector<8x32xf32> to vector<8x1xf32>
    %305 = vector.extract_strided_slice %202 {offsets = [17, 0], sizes = [1, 64], strides = [1, 1]} : vector<32x64xf32> to vector<1x64xf32>
    %306 = vector.broadcast %304 : vector<8x1xf32> to vector<8x64xf32>
    %307 = vector.broadcast %305 : vector<1x64xf32> to vector<8x64xf32>
    %308 = arith.mulf %306, %307 : vector<8x64xf32>
    %309 = arith.addf %303, %308 : vector<8x64xf32>
    %310 = vector.extract_strided_slice %200 {offsets = [0, 18], sizes = [8, 1], strides = [1, 1]} : vector<8x32xf32> to vector<8x1xf32>
    %311 = vector.extract_strided_slice %202 {offsets = [18, 0], sizes = [1, 64], strides = [1, 1]} : vector<32x64xf32> to vector<1x64xf32>
    %312 = vector.broadcast %310 : vector<8x1xf32> to vector<8x64xf32>
    %313 = vector.broadcast %311 : vector<1x64xf32> to vector<8x64xf32>
    %314 = arith.mulf %312, %313 : vector<8x64xf32>
    %315 = arith.addf %309, %314 : vector<8x64xf32>
    %316 = vector.extract_strided_slice %200 {offsets = [0, 19], sizes = [8, 1], strides = [1, 1]} : vector<8x32xf32> to vector<8x1xf32>
    %317 = vector.extract_strided_slice %202 {offsets = [19, 0], sizes = [1, 64], strides = [1, 1]} : vector<32x64xf32> to vector<1x64xf32>
    %318 = vector.broadcast %316 : vector<8x1xf32> to vector<8x64xf32>
    %319 = vector.broadcast %317 : vector<1x64xf32> to vector<8x64xf32>
    %320 = arith.mulf %318, %319 : vector<8x64xf32>
    %321 = arith.addf %315, %320 : vector<8x64xf32>
    %322 = vector.extract_strided_slice %200 {offsets = [0, 20], sizes = [8, 1], strides = [1, 1]} : vector<8x32xf32> to vector<8x1xf32>
    %323 = vector.extract_strided_slice %202 {offsets = [20, 0], sizes = [1, 64], strides = [1, 1]} : vector<32x64xf32> to vector<1x64xf32>
    %324 = vector.broadcast %322 : vector<8x1xf32> to vector<8x64xf32>
    %325 = vector.broadcast %323 : vector<1x64xf32> to vector<8x64xf32>
    %326 = arith.mulf %324, %325 : vector<8x64xf32>
    %327 = arith.addf %321, %326 : vector<8x64xf32>
    %328 = vector.extract_strided_slice %200 {offsets = [0, 21], sizes = [8, 1], strides = [1, 1]} : vector<8x32xf32> to vector<8x1xf32>
    %329 = vector.extract_strided_slice %202 {offsets = [21, 0], sizes = [1, 64], strides = [1, 1]} : vector<32x64xf32> to vector<1x64xf32>
    %330 = vector.broadcast %328 : vector<8x1xf32> to vector<8x64xf32>
    %331 = vector.broadcast %329 : vector<1x64xf32> to vector<8x64xf32>
    %332 = arith.mulf %330, %331 : vector<8x64xf32>
    %333 = arith.addf %327, %332 : vector<8x64xf32>
    %334 = vector.extract_strided_slice %200 {offsets = [0, 22], sizes = [8, 1], strides = [1, 1]} : vector<8x32xf32> to vector<8x1xf32>
    %335 = vector.extract_strided_slice %202 {offsets = [22, 0], sizes = [1, 64], strides = [1, 1]} : vector<32x64xf32> to vector<1x64xf32>
    %336 = vector.broadcast %334 : vector<8x1xf32> to vector<8x64xf32>
    %337 = vector.broadcast %335 : vector<1x64xf32> to vector<8x64xf32>
    %338 = arith.mulf %336, %337 : vector<8x64xf32>
    %339 = arith.addf %333, %338 : vector<8x64xf32>
    %340 = vector.extract_strided_slice %200 {offsets = [0, 23], sizes = [8, 1], strides = [1, 1]} : vector<8x32xf32> to vector<8x1xf32>
    %341 = vector.extract_strided_slice %202 {offsets = [23, 0], sizes = [1, 64], strides = [1, 1]} : vector<32x64xf32> to vector<1x64xf32>
    %342 = vector.broadcast %340 : vector<8x1xf32> to vector<8x64xf32>
    %343 = vector.broadcast %341 : vector<1x64xf32> to vector<8x64xf32>
    %344 = arith.mulf %342, %343 : vector<8x64xf32>
    %345 = arith.addf %339, %344 : vector<8x64xf32>
    %346 = vector.extract_strided_slice %200 {offsets = [0, 24], sizes = [8, 1], strides = [1, 1]} : vector<8x32xf32> to vector<8x1xf32>
    %347 = vector.extract_strided_slice %202 {offsets = [24, 0], sizes = [1, 64], strides = [1, 1]} : vector<32x64xf32> to vector<1x64xf32>
    %348 = vector.broadcast %346 : vector<8x1xf32> to vector<8x64xf32>
    %349 = vector.broadcast %347 : vector<1x64xf32> to vector<8x64xf32>
    %350 = arith.mulf %348, %349 : vector<8x64xf32>
    %351 = arith.addf %345, %350 : vector<8x64xf32>
    %352 = vector.extract_strided_slice %200 {offsets = [0, 25], sizes = [8, 1], strides = [1, 1]} : vector<8x32xf32> to vector<8x1xf32>
    %353 = vector.extract_strided_slice %202 {offsets = [25, 0], sizes = [1, 64], strides = [1, 1]} : vector<32x64xf32> to vector<1x64xf32>
    %354 = vector.broadcast %352 : vector<8x1xf32> to vector<8x64xf32>
    %355 = vector.broadcast %353 : vector<1x64xf32> to vector<8x64xf32>
    %356 = arith.mulf %354, %355 : vector<8x64xf32>
    %357 = arith.addf %351, %356 : vector<8x64xf32>
    %358 = vector.extract_strided_slice %200 {offsets = [0, 26], sizes = [8, 1], strides = [1, 1]} : vector<8x32xf32> to vector<8x1xf32>
    %359 = vector.extract_strided_slice %202 {offsets = [26, 0], sizes = [1, 64], strides = [1, 1]} : vector<32x64xf32> to vector<1x64xf32>
    %360 = vector.broadcast %358 : vector<8x1xf32> to vector<8x64xf32>
    %361 = vector.broadcast %359 : vector<1x64xf32> to vector<8x64xf32>
    %362 = arith.mulf %360, %361 : vector<8x64xf32>
    %363 = arith.addf %357, %362 : vector<8x64xf32>
    %364 = vector.extract_strided_slice %200 {offsets = [0, 27], sizes = [8, 1], strides = [1, 1]} : vector<8x32xf32> to vector<8x1xf32>
    %365 = vector.extract_strided_slice %202 {offsets = [27, 0], sizes = [1, 64], strides = [1, 1]} : vector<32x64xf32> to vector<1x64xf32>
    %366 = vector.broadcast %364 : vector<8x1xf32> to vector<8x64xf32>
    %367 = vector.broadcast %365 : vector<1x64xf32> to vector<8x64xf32>
    %368 = arith.mulf %366, %367 : vector<8x64xf32>
    %369 = arith.addf %363, %368 : vector<8x64xf32>
    %370 = vector.extract_strided_slice %200 {offsets = [0, 28], sizes = [8, 1], strides = [1, 1]} : vector<8x32xf32> to vector<8x1xf32>
    %371 = vector.extract_strided_slice %202 {offsets = [28, 0], sizes = [1, 64], strides = [1, 1]} : vector<32x64xf32> to vector<1x64xf32>
    %372 = vector.broadcast %370 : vector<8x1xf32> to vector<8x64xf32>
    %373 = vector.broadcast %371 : vector<1x64xf32> to vector<8x64xf32>
    %374 = arith.mulf %372, %373 : vector<8x64xf32>
    %375 = arith.addf %369, %374 : vector<8x64xf32>
    %376 = vector.extract_strided_slice %200 {offsets = [0, 29], sizes = [8, 1], strides = [1, 1]} : vector<8x32xf32> to vector<8x1xf32>
    %377 = vector.extract_strided_slice %202 {offsets = [29, 0], sizes = [1, 64], strides = [1, 1]} : vector<32x64xf32> to vector<1x64xf32>
    %378 = vector.broadcast %376 : vector<8x1xf32> to vector<8x64xf32>
    %379 = vector.broadcast %377 : vector<1x64xf32> to vector<8x64xf32>
    %380 = arith.mulf %378, %379 : vector<8x64xf32>
    %381 = arith.addf %375, %380 : vector<8x64xf32>
    %382 = vector.extract_strided_slice %200 {offsets = [0, 30], sizes = [8, 1], strides = [1, 1]} : vector<8x32xf32> to vector<8x1xf32>
    %383 = vector.extract_strided_slice %202 {offsets = [30, 0], sizes = [1, 64], strides = [1, 1]} : vector<32x64xf32> to vector<1x64xf32>
    %384 = vector.broadcast %382 : vector<8x1xf32> to vector<8x64xf32>
    %385 = vector.broadcast %383 : vector<1x64xf32> to vector<8x64xf32>
    %386 = arith.mulf %384, %385 : vector<8x64xf32>
    %387 = arith.addf %381, %386 : vector<8x64xf32>
    %388 = vector.extract_strided_slice %200 {offsets = [0, 31], sizes = [8, 1], strides = [1, 1]} : vector<8x32xf32> to vector<8x1xf32>
    %389 = vector.extract_strided_slice %202 {offsets = [31, 0], sizes = [1, 64], strides = [1, 1]} : vector<32x64xf32> to vector<1x64xf32>
    %390 = vector.broadcast %388 : vector<8x1xf32> to vector<8x64xf32>
    %391 = vector.broadcast %389 : vector<1x64xf32> to vector<8x64xf32>
    %392 = arith.mulf %390, %391 : vector<8x64xf32>
    %393 = arith.addf %387, %392 : vector<8x64xf32>
    %394 = vector.broadcast %201 : vector<1x64xf32> to vector<8x64xf32>
    %395 = arith.addf %393, %394 : vector<8x64xf32>
    %cst_16 = arith.constant 0.000000e+00 : f32
    %396 = vector.broadcast %cst_16 : f32 to vector<8x64xf32>
    %397 = arith.maximumf %395, %396 : vector<8x64xf32>
    %c5 = arith.constant 5 : index
    %c0_17 = arith.constant 0 : index
    %398 = vector.load %arg4[%c5, %c0_17] : memref<16x512xf32, #tpu.memory_space<vmem>>, vector<1x128xf32>
    %c0_18 = arith.constant 0 : index
    %c0_19 = arith.constant 0 : index
    %399 = vector.load %arg3[%c0_18, %c0_19] : memref<448x512xbf16, #tpu.memory_space<vmem>>, vector<64x128xbf16>
    %400 = arith.truncf %397 : vector<8x64xf32> to vector<8x64xbf16>
    %cst_20 = arith.constant dense<0.000000e+00> : vector<8x128xf32>
    %401 = tpu.matmul %400, %399, %cst_20 {dimension_numbers = #tpu.dot_dimension_numbers<[1], [0], [0], [1], [0, 0, 1, 1], [], []>} : vector<8x64xbf16>, vector<64x128xbf16>, vector<8x128xf32> -> vector<8x128xf32>
    %402 = vector.broadcast %398 : vector<1x128xf32> to vector<8x128xf32>
    %403 = arith.addf %401, %402 : vector<8x128xf32>
    %cst_21 = arith.constant 0.000000e+00 : f32
    %404 = vector.broadcast %cst_21 : f32 to vector<8x128xf32>
    %405 = arith.maximumf %403, %404 : vector<8x128xf32>
    %406 = arith.truncf %405 : vector<8x128xf32> to vector<8x128xbf16>
    %c6 = arith.constant 6 : index
    %c0_22 = arith.constant 0 : index
    %407 = vector.load %arg4[%c6, %c0_22] : memref<16x512xf32, #tpu.memory_space<vmem>>, vector<1x256xf32>
    %c64 = arith.constant 64 : index
    %c0_23 = arith.constant 0 : index
    %408 = vector.load %arg3[%c64, %c0_23] : memref<448x512xbf16, #tpu.memory_space<vmem>>, vector<128x256xbf16>
    %cst_24 = arith.constant dense<0.000000e+00> : vector<8x256xf32>
    %409 = tpu.matmul %406, %408, %cst_24 {dimension_numbers = #tpu.dot_dimension_numbers<[1], [0], [0], [1], [0, 0, 1, 1], [], []>} : vector<8x128xbf16>, vector<128x256xbf16>, vector<8x256xf32> -> vector<8x256xf32>
    %410 = vector.broadcast %407 : vector<1x256xf32> to vector<8x256xf32>
    %411 = arith.addf %409, %410 : vector<8x256xf32>
    %cst_25 = arith.constant 0.000000e+00 : f32
    %412 = vector.broadcast %cst_25 : f32 to vector<8x256xf32>
    %413 = arith.maximumf %411, %412 : vector<8x256xf32>
    %414 = arith.truncf %413 : vector<8x256xf32> to vector<8x256xbf16>
    %c7 = arith.constant 7 : index
    %c0_26 = arith.constant 0 : index
    %415 = vector.load %arg4[%c7, %c0_26] : memref<16x512xf32, #tpu.memory_space<vmem>>, vector<1x512xf32>
    %c192 = arith.constant 192 : index
    %c0_27 = arith.constant 0 : index
    %416 = vector.load %arg3[%c192, %c0_27] : memref<448x512xbf16, #tpu.memory_space<vmem>>, vector<256x512xbf16>
    %cst_28 = arith.constant dense<0.000000e+00> : vector<8x512xf32>
    %417 = tpu.matmul %414, %416, %cst_28 {dimension_numbers = #tpu.dot_dimension_numbers<[1], [0], [0], [1], [0, 0, 1, 1], [], []>} : vector<8x256xbf16>, vector<256x512xbf16>, vector<8x512xf32> -> vector<8x512xf32>
    %418 = vector.broadcast %415 : vector<1x512xf32> to vector<8x512xf32>
    %419 = arith.addf %417, %418 : vector<8x512xf32>
    %cst_29 = arith.constant 0.000000e+00 : f32
    %420 = vector.broadcast %cst_29 : f32 to vector<8x512xf32>
    %421 = arith.maximumf %419, %420 : vector<8x512xf32>
    %422 = arith.truncf %421 : vector<8x512xf32> to vector<8x512xbf16>
    %c8_30 = arith.constant 8 : index
    %c0_31 = arith.constant 0 : index
    %423 = vector.load %arg4[%c8_30, %c0_31] : memref<16x512xf32, #tpu.memory_space<vmem>>, vector<1x128xf32>
    %c72 = arith.constant 72 : index
    %c0_32 = arith.constant 0 : index
    %424 = vector.load %arg2[%c72, %c0_32] : memref<584x128xf32, #tpu.memory_space<vmem>>, vector<512x128xf32>
    %425 = arith.extf %422 : vector<8x512xbf16> to vector<8x512xf32>
    %cst_33 = arith.constant dense<0.000000e+00> : vector<8x128xf32>
    %426 = tpu.matmul %425, %424, %cst_33 {dimension_numbers = #tpu.dot_dimension_numbers<[1], [0], [0], [1], [0, 0, 1, 1], [], []>} : vector<8x512xf32>, vector<512x128xf32>, vector<8x128xf32> -> vector<8x128xf32>
    %427 = vector.broadcast %423 : vector<1x128xf32> to vector<8x128xf32>
    %428 = arith.addf %426, %427 : vector<8x128xf32>
    %c0_34 = arith.constant 0 : index
    %c0_35 = arith.constant 0 : index
    %429 = vector.load %arg5[%c0_34, %c0_35] : memref<8x128xf32, #tpu.memory_space<vmem>>, vector<8x128xf32>
    tpu.vector_store %arg5[%c0_34, %c0_35], %428 {strides = array<i32>} : memref<8x128xf32, #tpu.memory_space<vmem>>, vector<8x128xf32>,
    return
  }
  func.func @transform_0(%arg0: i32) -> (i32, i32) {
    %c0_i32 = arith.constant 0 : i32
    %c0_i32_0 = arith.constant 0 : i32
    return %arg0, %c0_i32 : i32, i32
  }
  func.func @transform_1(%arg0: i32) -> (i32, i32) {
    %c0_i32 = arith.constant 0 : i32
    %c0_i32_0 = arith.constant 0 : i32
    %c0_i32_1 = arith.constant 0 : i32
    return %c0_i32, %c0_i32_0 : i32, i32
  }
  func.func @transform_2(%arg0: i32) -> (i32, i32) {
    %c0_i32 = arith.constant 0 : i32
    %c0_i32_0 = arith.constant 0 : i32
    %c0_i32_1 = arith.constant 0 : i32
    return %c0_i32, %c0_i32_0 : i32, i32
  }
  func.func @transform_3(%arg0: i32) -> (i32, i32) {
    %c0_i32 = arith.constant 0 : i32
    %c0_i32_0 = arith.constant 0 : i32
    %c0_i32_1 = arith.constant 0 : i32
    return %c0_i32, %c0_i32_0 : i32, i32
  }
  func.func @transform_4(%arg0: i32) -> (i32, i32) {
    %c0_i32 = arith.constant 0 : i32
    %c0_i32_0 = arith.constant 0 : i32
    return %arg0, %c0_i32 : i32, i32
  }
}

</mosaic_0001>

<llo_original>
// kernel: tpu_custom_call.1
$region0: #{tpu_custom_call.1}
  #allocation0 [shape = 'u32[]', space=smem, size = 0x4, offset = 0x4, fixed_abs, tag = 'smem constant byte address 0x4 - core index']
  #allocation1 [shape = 'u32[144,128]{1,0:T(1,128)}', space=vmem, size = 0x12000, scoped, tag = 'internal scratch']
  %s0 = inlined_call_operand.vmem [shape: f32[8,2], index: 0, kind: input, shape index: {}]
  %s1 = inlined_call_operand.hbm [shape: f32[584,128], index: 1, kind: input, shape index: {}]
  %s2 = inlined_call_operand.hbm [shape: bf16[448,512], index: 2, kind: input, shape index: {}]
  %s3 = inlined_call_operand.hbm [shape: f32[16,512], index: 3, kind: input, shape index: {}]
  %s4 = inlined_call_operand.hbm [shape: f32[8,128], index: 4, kind: output, shape index: {}]
  %s5 = sld [smem:[#allocation0]]
  $region38: #{tpu_custom_call.1} parent=0
    _
  %s7 = ssub.s32 1, %s5
  %s8 = scalar_select 0, %s7, %s5
  $region1: #{tpu_custom_call.1} parent=0
    #allocation2 [shape = 'u8[299008]{0}', space=vmem, size = 0x49000, scoped, tag = 'input window, operand 1, single buffered']
    #allocation3 [shape = 's32[1]{0}', space=sflag, size = 0x4, scoped, tag = 'scoped memory for tpu_custom_call.1']
    #allocation4 [shape = 's32[1]{0}', space=sflag, size = 0x4, scoped, tag = 'scoped memory for tpu_custom_call.1']
    #allocation5 [shape = 'u8[458752]{0}', space=vmem, size = 0x70000, scoped, tag = 'input window, operand 2, single buffered']
    #allocation6 [shape = 's32[1]{0}', space=sflag, size = 0x4, scoped, tag = 'scoped memory for tpu_custom_call.1']
    #allocation7 [shape = 'u8[32768]{0}', space=vmem, size = 0x8000, scoped, tag = 'input window, operand 3, single buffered']
    #allocation8 [shape = 'u8[4096]{0}', space=vmem, size = 0x1000, scoped, tag = 'output window, operand 0, single buffered']
    %9 = vsyncpa [#allocation3], 0
    %10 = vsyncpa [#allocation6], 0
    %11 = vsyncpa [#allocation4], 0
    // Predicated region
    $region2: #{tpu_custom_call.1} parent=1 // pred_check
      _
    $region3: #{tpu_custom_call.1} parent=1 // pred_check_branch
      %13 = sbr.rel (0) target = $region5
    $region4: #{tpu_custom_call.1} parent=1 // pred_region
      _
    $region5: #{tpu_custom_call.1} parent=1 // pred_fallthru
      _
    // Predicated region
    $region6: #{tpu_custom_call.1} parent=1 // pred_check
      _
    $region7: #{tpu_custom_call.1} parent=1 // pred_check_branch
      %15 = sbr.rel (0) target = $region9
    $region8: #{tpu_custom_call.1} parent=1 // pred_region
      %s17 = ssub.s32 9344, 9344
      %18 = vsyncadd [#allocation3], %s17
      %s19 = sshll.u32 [#allocation2], 4
      %s20 = int_to_ptr.vmem [resolvable:$true] %s19
      %25 = dma.hbm_to_vmem [thread:$0]  %s1, 9344, %s20, [#allocation3], 128, 128, 8
    $region9: #{tpu_custom_call.1} parent=1 // pred_fallthru
      _
    // Predicated region
    $region10: #{tpu_custom_call.1} parent=1 // pred_check
      _
    $region11: #{tpu_custom_call.1} parent=1 // pred_check_branch
      %27 = sbr.rel (0) target = $region13
    $region12: #{tpu_custom_call.1} parent=1 // pred_region
      %s29 = ssub.s32 14336, 14336
      %30 = vsyncadd [#allocation6], %s29
      %s31 = sshll.u32 [#allocation5], 4
      %s32 = int_to_ptr.vmem [resolvable:$true] %s31
      %37 = dma.hbm_to_vmem [thread:$0]  %s2, 14336, %s32, [#allocation6], 256, 256, 16
    $region13: #{tpu_custom_call.1} parent=1 // pred_fallthru
      _
    // Predicated region
    $region14: #{tpu_custom_call.1} parent=1 // pred_check
      _
    $region15: #{tpu_custom_call.1} parent=1 // pred_check_branch
      %39 = sbr.rel (0) target = $region17
    $region16: #{tpu_custom_call.1} parent=1 // pred_region
      %s41 = ssub.s32 1024, 1024
      %42 = vsyncadd [#allocation6], %s41
      %s43 = sshll.u32 [#allocation7], 4
      %s44 = int_to_ptr.vmem [resolvable:$true] %s43
      %49 = dma.hbm_to_vmem [thread:$0]  %s3, 1024, %s44, [#allocation6], 512, 512, 32
    $region17: #{tpu_custom_call.1} parent=1 // pred_fallthru
      _
    // Predicated region
    $region18: #{tpu_custom_call.1} parent=1 // pred_check
      _
    $region19: #{tpu_custom_call.1} parent=1 // pred_check_branch
      %51 = sbr.rel (0) target = $region21
    $region20: #{tpu_custom_call.1} parent=1 // pred_region
      %52 = dma.done [#allocation3], 9344
    $region21: #{tpu_custom_call.1} parent=1 // pred_fallthru
      _
    // Predicated region
    $region22: #{tpu_custom_call.1} parent=1 // pred_check
      _
    $region23: #{tpu_custom_call.1} parent=1 // pred_check_branch
      %54 = sbr.rel (0) target = $region25
    $region24: #{tpu_custom_call.1} parent=1 // pred_region
      %55 = dma.done [#allocation6], 14336
    $region25: #{tpu_custom_call.1} parent=1 // pred_fallthru
      _
    // Predicated region
    $region26: #{tpu_custom_call.1} parent=1 // pred_check
      _
    $region27: #{tpu_custom_call.1} parent=1 // pred_check_branch
      %57 = sbr.rel (0) target = $region29
    $region28: #{tpu_custom_call.1} parent=1 // pred_region
      %58 = dma.done [#allocation6], 1024
    $region29: #{tpu_custom_call.1} parent=1 // pred_fallthru
      _
    %v60 = vld [vmem:[%s0] sm:$0xff]
    %v61 = vld [vmem:[#allocation7] ss:$0 sm:$0xff]
    %v62 = vld [vmem:[#allocation2] sm:$0x3]
    %64 = vset.pattern.permute.xlu0 0
    %65 = vperm.xlu0 %64, %v60
    %v66 = vpop.permute.xlu0 %65
    %v68 = vlaneseq
    %v69 = vshrl.u32 %v68, 7
    %v70 = vsub.s32 0, %v69
    %v71 = vrot.slane %v62, %v70
    %v72 = vmul.f32 %v66, %v71
    %73 = vset.pattern.permute.xlu0 1
    %74 = vperm.xlu0 %73, %v60
    %v75 = vpop.permute.xlu0 %74
    %v77 = vlaneseq
    %v78 = vshrl.u32 %v77, 7
    %v79 = vsub.s32 1, %v78
    %v80 = vrot.slane %v62, %v79
    %v81 = vmul.f32 %v75, %v80
    %v82 = vadd.f32 %v72, %v81
    %v83 = vadd.f32 %v82, %v61
    %v84 = vmax.f32 %v83, 0.0
    %v85 = vld [vmem:[#allocation7 + $0x1] ss:$0 sm:$0xff]
    %v86 = vld [vmem:[#allocation2 + $0x8] sm:$0xf]
    %88 = vset.pattern.permute.xlu0 0
    %89 = vperm.xlu0 %88, %v84
    %v90 = vpop.permute.xlu0 %89
    %v92 = vlaneseq
    %v93 = vshrl.u32 %v92, 7
    %v94 = vsub.s32 0, %v93
    %v95 = vrot.slane %v86, %v94
    %v96 = vmul.f32 %v90, %v95
    %97 = vset.pattern.permute.xlu0 1
    %98 = vperm.xlu0 %97, %v84
    %v99 = vpop.permute.xlu0 %98
    %v101 = vlaneseq
    %v102 = vshrl.u32 %v101, 7
    %v103 = vsub.s32 1, %v102
    %v104 = vrot.slane %v86, %v103
    %v105 = vmul.f32 %v99, %v104
    %v106 = vadd.f32 %v96, %v105
    %107 = vset.pattern.permute.xlu0 2
    %108 = vperm.xlu0 %107, %v84
    %v109 = vpop.permute.xlu0 %108
    %v111 = vlaneseq
    %v112 = vshrl.u32 %v111, 7
    %v113 = vsub.s32 2, %v112
    %v114 = vrot.slane %v86, %v113
    %v115 = vmul.f32 %v109, %v114
    %v116 = vadd.f32 %v106, %v115
    %117 = vset.pattern.permute.xlu0 3
    %118 = vperm.xlu0 %117, %v84
    %v119 = vpop.permute.xlu0 %118
    %v121 = vlaneseq
    %v122 = vshrl.u32 %v121, 7
    %v123 = vsub.s32 3, %v122
    %v124 = vrot.slane %v86, %v123
    %v125 = vmul.f32 %v119, %v124
    %v126 = vadd.f32 %v116, %v125
    %v127 = vadd.f32 %v126, %v85
    %v128 = vmax.f32 %v127, 0.0
    %v129 = vld [vmem:[#allocation7 + $0x2] ss:$0 sm:$0xff]
    %v130 = vld [vmem:[#allocation2 + $0x10] sm:$0xff]
    %132 = vset.pattern.permute.xlu0 0
    %133 = vperm.xlu0 %132, %v128
    %v134 = vpop.permute.xlu0 %133
    %v136 = vlaneseq
    %v137 = vshrl.u32 %v136, 7
    %v138 = vsub.s32 0, %v137
    %v139 = vrot.slane %v130, %v138
    %v140 = vmul.f32 %v134, %v139
    %141 = vset.pattern.permute.xlu0 1
    %142 = vperm.xlu0 %141, %v128
    %v143 = vpop.permute.xlu0 %142
    %v145 = vlaneseq
    %v146 = vshrl.u32 %v145, 7
    %v147 = vsub.s32 1, %v146
    %v148 = vrot.slane %v130, %v147
    %v149 = vmul.f32 %v143, %v148
    %v150 = vadd.f32 %v140, %v149
    %151 = vset.pattern.permute.xlu0 2
    %152 = vperm.xlu0 %151, %v128
    %v153 = vpop.permute.xlu0 %152
    %v155 = vlaneseq
    %v156 = vshrl.u32 %v155, 7
    %v157 = vsub.s32 2, %v156
    %v158 = vrot.slane %v130, %v157
    %v159 = vmul.f32 %v153, %v158
    %v160 = vadd.f32 %v150, %v159
    %161 = vset.pattern.permute.xlu0 3
    %162 = vperm.xlu0 %161, %v128
    %v163 = vpop.permute.xlu0 %162
    %v165 = vlaneseq
    %v166 = vshrl.u32 %v165, 7
    %v167 = vsub.s32 3, %v166
    %v168 = vrot.slane %v130, %v167
    %v169 = vmul.f32 %v163, %v168
    %v170 = vadd.f32 %v160, %v169
    %171 = vset.pattern.permute.xlu0 4
    %172 = vperm.xlu0 %171, %v128
    %v173 = vpop.permute.xlu0 %172
    %v175 = vlaneseq
    %v176 = vshrl.u32 %v175, 7
    %v177 = vsub.s32 4, %v176
    %v178 = vrot.slane %v130, %v177
    %v179 = vmul.f32 %v173, %v178
    %v180 = vadd.f32 %v170, %v179
    %181 = vset.pattern.permute.xlu0 5
    %182 = vperm.xlu0 %181, %v128
    %v183 = vpop.permute.xlu0 %182
    %v185 = vlaneseq
    %v186 = vshrl.u32 %v185, 7
    %v187 = vsub.s32 5, %v186
    %v188 = vrot.slane %v130, %v187
    %v189 = vmul.f32 %v183, %v188
    %v190 = vadd.f32 %v180, %v189
    %191 = vset.pattern.permute.xlu0 6
    %192 = vperm.xlu0 %191, %v128
    %v193 = vpop.permute.xlu0 %192
    %v195 = vlaneseq
    %v196 = vshrl.u32 %v195, 7
    %v197 = vsub.s32 6, %v196
    %v198 = vrot.slane %v130, %v197
    %v199 = vmul.f32 %v193, %v198
    %v200 = vadd.f32 %v190, %v199
    %201 = vset.pattern.permute.xlu0 7
    %202 = vperm.xlu0 %201, %v128
    %v203 = vpop.permute.xlu0 %202
    %v205 = vlaneseq
    %v206 = vshrl.u32 %v205, 7
    %v207 = vsub.s32 7, %v206
    %v208 = vrot.slane %v130, %v207
    %v209 = vmul.f32 %v203, %v208
    %v210 = vadd.f32 %v200, %v209
    %v211 = vadd.f32 %v210, %v129
    %v212 = vmax.f32 %v211, 0.0
    %v213 = vld [vmem:[#allocation7 + $0x3] ss:$0 sm:$0xff]
    %v214 = vld [vmem:[#allocation2 + $0x18] sm:$0xff]
    %v215 = vld [vmem:[#allocation2 + $0x20] sm:$0xff]
    %217 = vset.pattern.permute.xlu0 0
    %218 = vperm.xlu0 %217, %v212
    %v219 = vpop.permute.xlu0 %218
    %v221 = vlaneseq
    %v222 = vshrl.u32 %v221, 7
    %v223 = vsub.s32 0, %v222
    %v224 = vrot.slane %v214, %v223
    %v225 = vmul.f32 %v219, %v224
    %226 = vset.pattern.permute.xlu0 1
    %227 = vperm.xlu0 %226, %v212
    %v228 = vpop.permute.xlu0 %227
    %v230 = vlaneseq
    %v231 = vshrl.u32 %v230, 7
    %v232 = vsub.s32 1, %v231
    %v233 = vrot.slane %v214, %v232
    %v234 = vmul.f32 %v228, %v233
    %v235 = vadd.f32 %v225, %v234
    %236 = vset.pattern.permute.xlu0 2
    %237 = vperm.xlu0 %236, %v212
    %v238 = vpop.permute.xlu0 %237
    %v240 = vlaneseq
    %v241 = vshrl.u32 %v240, 7
    %v242 = vsub.s32 2, %v241
    %v243 = vrot.slane %v214, %v242
    %v244 = vmul.f32 %v238, %v243
    %v245 = vadd.f32 %v235, %v244
    %246 = vset.pattern.permute.xlu0 3
    %247 = vperm.xlu0 %246, %v212
    %v248 = vpop.permute.xlu0 %247
    %v250 = vlaneseq
    %v251 = vshrl.u32 %v250, 7
    %v252 = vsub.s32 3, %v251
    %v253 = vrot.slane %v214, %v252
    %v254 = vmul.f32 %v248, %v253
    %v255 = vadd.f32 %v245, %v254
    %256 = vset.pattern.permute.xlu0 4
    %257 = vperm.xlu0 %256, %v212
    %v258 = vpop.permute.xlu0 %257
    %v260 = vlaneseq
    %v261 = vshrl.u32 %v260, 7
    %v262 = vsub.s32 4, %v261
    %v263 = vrot.slane %v214, %v262
    %v264 = vmul.f32 %v258, %v263
    %v265 = vadd.f32 %v255, %v264
    %266 = vset.pattern.permute.xlu0 5
    %267 = vperm.xlu0 %266, %v212
    %v268 = vpop.permute.xlu0 %267
    %v270 = vlaneseq
    %v271 = vshrl.u32 %v270, 7
    %v272 = vsub.s32 5, %v271
    %v273 = vrot.slane %v214, %v272
    %v274 = vmul.f32 %v268, %v273
    %v275 = vadd.f32 %v265, %v274
    %276 = vset.pattern.permute.xlu0 6
    %277 = vperm.xlu0 %276, %v212
    %v278 = vpop.permute.xlu0 %277
    %v280 = vlaneseq
    %v281 = vshrl.u32 %v280, 7
    %v282 = vsub.s32 6, %v281
    %v283 = vrot.slane %v214, %v282
    %v284 = vmul.f32 %v278, %v283
    %v285 = vadd.f32 %v275, %v284
    %286 = vset.pattern.permute.xlu0 7
    %287 = vperm.xlu0 %286, %v212
    %v288 = vpop.permute.xlu0 %287
    %v290 = vlaneseq
    %v291 = vshrl.u32 %v290, 7
    %v292 = vsub.s32 7, %v291
    %v293 = vrot.slane %v214, %v292
    %v294 = vmul.f32 %v288, %v293
    %v295 = vadd.f32 %v285, %v294
    %296 = vset.pattern.permute.xlu0 8
    %297 = vperm.xlu0 %296, %v212
    %v298 = vpop.permute.xlu0 %297
    %v300 = vlaneseq
    %v301 = vshrl.u32 %v300, 7
    %v302 = vsub.s32 0, %v301
    %v303 = vrot.slane %v215, %v302
    %v304 = vmul.f32 %v298, %v303
    %v305 = vadd.f32 %v295, %v304
    %306 = vset.pattern.permute.xlu0 9
    %307 = vperm.xlu0 %306, %v212
    %v308 = vpop.permute.xlu0 %307
    %v310 = vlaneseq
    %v311 = vshrl.u32 %v310, 7
    %v312 = vsub.s32 1, %v311
    %v313 = vrot.slane %v215, %v312
    %v314 = vmul.f32 %v308, %v313
    %v315 = vadd.f32 %v305, %v314
    %316 = vset.pattern.permute.xlu0 10
    %317 = vperm.xlu0 %316, %v212
    %v318 = vpop.permute.xlu0 %317
    %v320 = vlaneseq
    %v321 = vshrl.u32 %v320, 7
    %v322 = vsub.s32 2, %v321
    %v323 = vrot.slane %v215, %v322
    %v324 = vmul.f32 %v318, %v323
    %v325 = vadd.f32 %v315, %v324
    %326 = vset.pattern.permute.xlu0 11
    %327 = vperm.xlu0 %326, %v212
    %v328 = vpop.permute.xlu0 %327
    %v330 = vlaneseq
    %v331 = vshrl.u32 %v330, 7
    %v332 = vsub.s32 3, %v331
    %v333 = vrot.slane %v215, %v332
    %v334 = vmul.f32 %v328, %v333
    %v335 = vadd.f32 %v325, %v334
    %336 = vset.pattern.permute.xlu0 12
    %337 = vperm.xlu0 %336, %v212
    %v338 = vpop.permute.xlu0 %337
    %v340 = vlaneseq
    %v341 = vshrl.u32 %v340, 7
    %v342 = vsub.s32 4, %v341
    %v343 = vrot.slane %v215, %v342
    %v344 = vmul.f32 %v338, %v343
    %v345 = vadd.f32 %v335, %v344
    %346 = vset.pattern.permute.xlu0 13
    %347 = vperm.xlu0 %346, %v212
    %v348 = vpop.permute.xlu0 %347
    %v350 = vlaneseq
    %v351 = vshrl.u32 %v350, 7
    %v352 = vsub.s32 5, %v351
    %v353 = vrot.slane %v215, %v352
    %v354 = vmul.f32 %v348, %v353
    %v355 = vadd.f32 %v345, %v354
    %356 = vset.pattern.permute.xlu0 14
    %357 = vperm.xlu0 %356, %v212
    %v358 = vpop.permute.xlu0 %357
    %v360 = vlaneseq
    %v361 = vshrl.u32 %v360, 7
    %v362 = vsub.s32 6, %v361
    %v363 = vrot.slane %v215, %v362
    %v364 = vmul.f32 %v358, %v363
    %v365 = vadd.f32 %v355, %v364
    %366 = vset.pattern.permute.xlu0 15
    %367 = vperm.xlu0 %366, %v212
    %v368 = vpop.permute.xlu0 %367
    %v370 = vlaneseq
    %v371 = vshrl.u32 %v370, 7
    %v372 = vsub.s32 7, %v371
    %v373 = vrot.slane %v215, %v372
    %v374 = vmul.f32 %v368, %v373
    %v375 = vadd.f32 %v365, %v374
    %v376 = vadd.f32 %v375, %v213
    %v377 = vmax.f32 %v376, 0.0
    %v378 = vld [vmem:[#allocation7 + $0x4] ss:$0 sm:$0xff]
    %v379 = vld [vmem:[#allocation2 + $0x28] sm:$0xff]
    %v380 = vld [vmem:[#allocation2 + $0x30] sm:$0xff]
    %v381 = vld [vmem:[#allocation2 + $0x38] sm:$0xff]
    %v382 = vld [vmem:[#allocation2 + $0x40] sm:$0xff]
    %384 = vset.pattern.permute.xlu0 0
    %385 = vperm.xlu0 %384, %v377
    %v386 = vpop.permute.xlu0 %385
    %v388 = vlaneseq
    %v389 = vshrl.u32 %v388, 7
    %v390 = vsub.s32 0, %v389
    %v391 = vrot.slane %v379, %v390
    %v392 = vmul.f32 %v386, %v391
    %393 = vset.pattern.permute.xlu0 1
    %394 = vperm.xlu0 %393, %v377
    %v395 = vpop.permute.xlu0 %394
    %v397 = vlaneseq
    %v398 = vshrl.u32 %v397, 7
    %v399 = vsub.s32 1, %v398
    %v400 = vrot.slane %v379, %v399
    %v401 = vmul.f32 %v395, %v400
    %v402 = vadd.f32 %v392, %v401
    %403 = vset.pattern.permute.xlu0 2
    %404 = vperm.xlu0 %403, %v377
    %v405 = vpop.permute.xlu0 %404
    %v407 = vlaneseq
    %v408 = vshrl.u32 %v407, 7
    %v409 = vsub.s32 2, %v408
    %v410 = vrot.slane %v379, %v409
    %v411 = vmul.f32 %v405, %v410
    %v412 = vadd.f32 %v402, %v411
    %413 = vset.pattern.permute.xlu0 3
    %414 = vperm.xlu0 %413, %v377
    %v415 = vpop.permute.xlu0 %414
    %v417 = vlaneseq
    %v418 = vshrl.u32 %v417, 7
    %v419 = vsub.s32 3, %v418
    %v420 = vrot.slane %v379, %v419
    %v421 = vmul.f32 %v415, %v420
    %v422 = vadd.f32 %v412, %v421
    %423 = vset.pattern.permute.xlu0 4
    %424 = vperm.xlu0 %423, %v377
    %v425 = vpop.permute.xlu0 %424
    %v427 = vlaneseq
    %v428 = vshrl.u32 %v427, 7
    %v429 = vsub.s32 4, %v428
    %v430 = vrot.slane %v379, %v429
    %v431 = vmul.f32 %v425, %v430
    %v432 = vadd.f32 %v422, %v431
    %433 = vset.pattern.permute.xlu0 5
    %434 = vperm.xlu0 %433, %v377
    %v435 = vpop.permute.xlu0 %434
    %v437 = vlaneseq
    %v438 = vshrl.u32 %v437, 7
    %v439 = vsub.s32 5, %v438
    %v440 = vrot.slane %v379, %v439
    %v441 = vmul.f32 %v435, %v440
    %v442 = vadd.f32 %v432, %v441
    %443 = vset.pattern.permute.xlu0 6
    %444 = vperm.xlu0 %443, %v377
    %v445 = vpop.permute.xlu0 %444
    %v447 = vlaneseq
    %v448 = vshrl.u32 %v447, 7
    %v449 = vsub.s32 6, %v448
    %v450 = vrot.slane %v379, %v449
    %v451 = vmul.f32 %v445, %v450
    %v452 = vadd.f32 %v442, %v451
    %453 = vset.pattern.permute.xlu0 7
    %454 = vperm.xlu0 %453, %v377
    %v455 = vpop.permute.xlu0 %454
    %v457 = vlaneseq
    %v458 = vshrl.u32 %v457, 7
    %v459 = vsub.s32 7, %v458
    %v460 = vrot.slane %v379, %v459
    %v461 = vmul.f32 %v455, %v460
    %v462 = vadd.f32 %v452, %v461
    %463 = vset.pattern.permute.xlu0 8
    %464 = vperm.xlu0 %463, %v377
    %v465 = vpop.permute.xlu0 %464
    %v467 = vlaneseq
    %v468 = vshrl.u32 %v467, 7
    %v469 = vsub.s32 0, %v468
    %v470 = vrot.slane %v380, %v469
    %v471 = vmul.f32 %v465, %v470
    %v472 = vadd.f32 %v462, %v471
    %473 = vset.pattern.permute.xlu0 9
    %474 = vperm.xlu0 %473, %v377
    %v475 = vpop.permute.xlu0 %474
    %v477 = vlaneseq
    %v478 = vshrl.u32 %v477, 7
    %v479 = vsub.s32 1, %v478
    %v480 = vrot.slane %v380, %v479
    %v481 = vmul.f32 %v475, %v480
    %v482 = vadd.f32 %v472, %v481
    %483 = vset.pattern.permute.xlu0 10
    %484 = vperm.xlu0 %483, %v377
    %v485 = vpop.permute.xlu0 %484
    %v487 = vlaneseq
    %v488 = vshrl.u32 %v487, 7
    %v489 = vsub.s32 2, %v488
    %v490 = vrot.slane %v380, %v489
    %v491 = vmul.f32 %v485, %v490
    %v492 = vadd.f32 %v482, %v491
    %493 = vset.pattern.permute.xlu0 11
    %494 = vperm.xlu0 %493, %v377
    %v495 = vpop.permute.xlu0 %494
    %v497 = vlaneseq
    %v498 = vshrl.u32 %v497, 7
    %v499 = vsub.s32 3, %v498
    %v500 = vrot.slane %v380, %v499
    %v501 = vmul.f32 %v495, %v500
    %v502 = vadd.f32 %v492, %v501
    %503 = vset.pattern.permute.xlu0 12
    %504 = vperm.xlu0 %503, %v377
    %v505 = vpop.permute.xlu0 %504
    %v507 = vlaneseq
    %v508 = vshrl.u32 %v507, 7
    %v509 = vsub.s32 4, %v508
    %v510 = vrot.slane %v380, %v509
    %v511 = vmul.f32 %v505, %v510
    %v512 = vadd.f32 %v502, %v511
    %513 = vset.pattern.permute.xlu0 13
    %514 = vperm.xlu0 %513, %v377
    %v515 = vpop.permute.xlu0 %514
    %v517 = vlaneseq
    %v518 = vshrl.u32 %v517, 7
    %v519 = vsub.s32 5, %v518
    %v520 = vrot.slane %v380, %v519
    %v521 = vmul.f32 %v515, %v520
    %v522 = vadd.f32 %v512, %v521
    %523 = vset.pattern.permute.xlu0 14
    %524 = vperm.xlu0 %523, %v377
    %v525 = vpop.permute.xlu0 %524
    %v527 = vlaneseq
    %v528 = vshrl.u32 %v527, 7
    %v529 = vsub.s32 6, %v528
    %v530 = vrot.slane %v380, %v529
    %v531 = vmul.f32 %v525, %v530
    %v532 = vadd.f32 %v522, %v531
    %533 = vset.pattern.permute.xlu0 15
    %534 = vperm.xlu0 %533, %v377
    %v535 = vpop.permute.xlu0 %534
    %v537 = vlaneseq
    %v538 = vshrl.u32 %v537, 7
    %v539 = vsub.s32 7, %v538
    %v540 = vrot.slane %v380, %v539
    %v541 = vmul.f32 %v535, %v540
    %v542 = vadd.f32 %v532, %v541
    %543 = vset.pattern.permute.xlu0 16
    %544 = vperm.xlu0 %543, %v377
    %v545 = vpop.permute.xlu0 %544
    %v547 = vlaneseq
    %v548 = vshrl.u32 %v547, 7
    %v549 = vsub.s32 0, %v548
    %v550 = vrot.slane %v381, %v549
    %v551 = vmul.f32 %v545, %v550
    %v552 = vadd.f32 %v542, %v551
    %553 = vset.pattern.permute.xlu0 17
    %554 = vperm.xlu0 %553, %v377
    %v555 = vpop.permute.xlu0 %554
    %v557 = vlaneseq
    %v558 = vshrl.u32 %v557, 7
    %v559 = vsub.s32 1, %v558
    %v560 = vrot.slane %v381, %v559
    %v561 = vmul.f32 %v555, %v560
    %v562 = vadd.f32 %v552, %v561
    %563 = vset.pattern.permute.xlu0 18
    %564 = vperm.xlu0 %563, %v377
    %v565 = vpop.permute.xlu0 %564
    %v567 = vlaneseq
    %v568 = vshrl.u32 %v567, 7
    %v569 = vsub.s32 2, %v568
    %v570 = vrot.slane %v381, %v569
    %v571 = vmul.f32 %v565, %v570
    %v572 = vadd.f32 %v562, %v571
    %573 = vset.pattern.permute.xlu0 19
    %574 = vperm.xlu0 %573, %v377
    %v575 = vpop.permute.xlu0 %574
    %v577 = vlaneseq
    %v578 = vshrl.u32 %v577, 7
    %v579 = vsub.s32 3, %v578
    %v580 = vrot.slane %v381, %v579
    %v581 = vmul.f32 %v575, %v580
    %v582 = vadd.f32 %v572, %v581
    %583 = vset.pattern.permute.xlu0 20
    %584 = vperm.xlu0 %583, %v377
    %v585 = vpop.permute.xlu0 %584
    %v587 = vlaneseq
    %v588 = vshrl.u32 %v587, 7
    %v589 = vsub.s32 4, %v588
    %v590 = vrot.slane %v381, %v589
    %v591 = vmul.f32 %v585, %v590
    %v592 = vadd.f32 %v582, %v591
    %593 = vset.pattern.permute.xlu0 21
    %594 = vperm.xlu0 %593, %v377
    %v595 = vpop.permute.xlu0 %594
    %v597 = vlaneseq
    %v598 = vshrl.u32 %v597, 7
    %v599 = vsub.s32 5, %v598
    %v600 = vrot.slane %v381, %v599
    %v601 = vmul.f32 %v595, %v600
    %v602 = vadd.f32 %v592, %v601
    %603 = vset.pattern.permute.xlu0 22
    %604 = vperm.xlu0 %603, %v377
    %v605 = vpop.permute.xlu0 %604
    %v607 = vlaneseq
    %v608 = vshrl.u32 %v607, 7
    %v609 = vsub.s32 6, %v608
    %v610 = vrot.slane %v381, %v609
    %v611 = vmul.f32 %v605, %v610
    %v612 = vadd.f32 %v602, %v611
    %613 = vset.pattern.permute.xlu0 23
    %614 = vperm.xlu0 %613, %v377
    %v615 = vpop.permute.xlu0 %614
    %v617 = vlaneseq
    %v618 = vshrl.u32 %v617, 7
    %v619 = vsub.s32 7, %v618
    %v620 = vrot.slane %v381, %v619
    %v621 = vmul.f32 %v615, %v620
    %v622 = vadd.f32 %v612, %v621
    %623 = vset.pattern.permute.xlu0 24
    %624 = vperm.xlu0 %623, %v377
    %v625 = vpop.permute.xlu0 %624
    %v627 = vlaneseq
    %v628 = vshrl.u32 %v627, 7
    %v629 = vsub.s32 0, %v628
    %v630 = vrot.slane %v382, %v629
    %v631 = vmul.f32 %v625, %v630
    %v632 = vadd.f32 %v622, %v631
    %633 = vset.pattern.permute.xlu0 25
    %634 = vperm.xlu0 %633, %v377
    %v635 = vpop.permute.xlu0 %634
    %v637 = vlaneseq
    %v638 = vshrl.u32 %v637, 7
    %v639 = vsub.s32 1, %v638
    %v640 = vrot.slane %v382, %v639
    %v641 = vmul.f32 %v635, %v640
    %v642 = vadd.f32 %v632, %v641
    %643 = vset.pattern.permute.xlu0 26
    %644 = vperm.xlu0 %643, %v377
    %v645 = vpop.permute.xlu0 %644
    %v647 = vlaneseq
    %v648 = vshrl.u32 %v647, 7
    %v649 = vsub.s32 2, %v648
    %v650 = vrot.slane %v382, %v649
    %v651 = vmul.f32 %v645, %v650
    %v652 = vadd.f32 %v642, %v651
    %653 = vset.pattern.permute.xlu0 27
    %654 = vperm.xlu0 %653, %v377
    %v655 = vpop.permute.xlu0 %654
    %v657 = vlaneseq
    %v658 = vshrl.u32 %v657, 7
    %v659 = vsub.s32 3, %v658
    %v660 = vrot.slane %v382, %v659
    %v661 = vmul.f32 %v655, %v660
    %v662 = vadd.f32 %v652, %v661
    %663 = vset.pattern.permute.xlu0 28
    %664 = vperm.xlu0 %663, %v377
    %v665 = vpop.permute.xlu0 %664
    %v667 = vlaneseq
    %v668 = vshrl.u32 %v667, 7
    %v669 = vsub.s32 4, %v668
    %v670 = vrot.slane %v382, %v669
    %v671 = vmul.f32 %v665, %v670
    %v672 = vadd.f32 %v662, %v671
    %673 = vset.pattern.permute.xlu0 29
    %674 = vperm.xlu0 %673, %v377
    %v675 = vpop.permute.xlu0 %674
    %v677 = vlaneseq
    %v678 = vshrl.u32 %v677, 7
    %v679 = vsub.s32 5, %v678
    %v680 = vrot.slane %v382, %v679
    %v681 = vmul.f32 %v675, %v680
    %v682 = vadd.f32 %v672, %v681
    %683 = vset.pattern.permute.xlu0 30
    %684 = vperm.xlu0 %683, %v377
    %v685 = vpop.permute.xlu0 %684
    %v687 = vlaneseq
    %v688 = vshrl.u32 %v687, 7
    %v689 = vsub.s32 6, %v688
    %v690 = vrot.slane %v382, %v689
    %v691 = vmul.f32 %v685, %v690
    %v692 = vadd.f32 %v682, %v691
    %693 = vset.pattern.permute.xlu0 31
    %694 = vperm.xlu0 %693, %v377
    %v695 = vpop.permute.xlu0 %694
    %v697 = vlaneseq
    %v698 = vshrl.u32 %v697, 7
    %v699 = vsub.s32 7, %v698
    %v700 = vrot.slane %v382, %v699
    %v701 = vmul.f32 %v695, %v700
    %v702 = vadd.f32 %v692, %v701
    %v703 = vadd.f32 %v702, %v378
    %v704 = vmax.f32 %v703, 0.0
    %v705 = vld [vmem:[#allocation7 + $0x5] ss:$0 sm:$0xff]
    %v706 = vld [vmem:[#allocation5] sm:$0xf]
    %v707 = vld [vmem:[#allocation5 + $0x10] sm:$0xf]
    %v708 = vld [vmem:[#allocation5 + $0x20] sm:$0xf]
    %v709 = vld [vmem:[#allocation5 + $0x30] sm:$0xf]
    %v710 = vld [vmem:[#allocation5 + $0x40] sm:$0xf]
    %v711 = vld [vmem:[#allocation5 + $0x50] sm:$0xf]
    %v712 = vld [vmem:[#allocation5 + $0x60] sm:$0xf]
    %v713 = vld [vmem:[#allocation5 + $0x70] sm:$0xf]
    %v714 = vpack.c.bf16 %v704, %v704
    %v723 = vunpack.c.l.b16 %v706
    %v724 = vunpack.c.l.b16 %v707
    %v725 = vunpack.c.l.b16 %v708
    %v726 = vunpack.c.l.b16 %v709
    %v727 = vunpack.c.l.b16 %v710
    %v728 = vunpack.c.l.b16 %v711
    %v729 = vunpack.c.l.b16 %v712
    %v730 = vunpack.c.l.b16 %v713
    %v731 = vpack.c.b16 %v724, %v723
    %v732 = vpack.c.b16 %v726, %v725
    %v733 = vpack.c.b16 %v728, %v727
    %v734 = vpack.c.b16 %v730, %v729
    %vm739 = vcmask 523264
    %v741 = vsel %vm739, %v714, 0
    %743 = vmatprep.subr.bf16.mxu0 0
    %744 = vmatpush1.bf16.msra.mxu0 0
    %745 = vmatprep.subr.bf16.mxu0 0
    %746 = vmatpush1.bf16.msra.mxu0 0
    %747 = vmatprep.subr.bf16.mxu0 0
    %748 = vmatpush1.bf16.msra.mxu0 0
    %749 = vmatprep.subr.bf16.mxu0 0
    %750 = vmatpush1.bf16.msra.mxu0 0
    %751 = vmatprep.subr.bf16.mxu0 0
    %752 = vmatpush1.bf16.msra.mxu0 %v734
    %753 = vmatprep.subr.bf16.mxu0 0
    %754 = vmatpush1.bf16.msra.mxu0 %v733
    %755 = vmatprep.subr.bf16.mxu0 0
    %756 = vmatpush1.bf16.msra.mxu0 %v732
    %757 = vmatprep.subr.bf16.mxu0 0
    %758 = vmatpush1.bf16.msra.mxu0 %v731
    %759 = vmatprep.subr.bf16.mxu0 0
    %760 = vmatpush2.bf16.msra.mxu0 0
    %761 = vmatprep.subr.bf16.mxu0 0
    %762 = vmatpush2.bf16.msra.mxu0 0
    %763 = vmatprep.subr.bf16.mxu0 0
    %764 = vmatpush2.bf16.msra.mxu0 0
    %765 = vmatprep.subr.bf16.mxu0 0
    %766 = vmatpush2.bf16.msra.mxu0 0
    %767 = vmatprep.subr.bf16.mxu0 0
    %768 = vmatpush2.bf16.msra.mxu0 0
    %769 = vmatprep.subr.bf16.mxu0 0
    %770 = vmatpush2.bf16.msra.mxu0 0
    %771 = vmatprep.subr.bf16.mxu0 0
    %772 = vmatpush2.bf16.msra.mxu0 0
    %773 = vmatprep.subr.bf16.mxu0 0
    %774 = vmatpush2.bf16.msra.mxu0 0
    %775 = vmatprep.mubr.bf16.mxu0 0
    %776 = vmatmul.mubr.bf16.gmra.mxu0 %v741
    %v777 = vpop.f32.mrf.mxu0
    %v778 = vadd.f32 %v705, %v777
    %v779 = vpop.f32.mrf.mxu0
    %v780 = vpop.f32.mrf.mxu0
    %v781 = vpop.f32.mrf.mxu0
    %782 = vdwg.mxu0
    %v783 = vmax.f32 %v778, 0.0
    %v784 = vpack.c.bf16 %v783, %v783
    %s785 = scalar_lea.vmem [#allocation7], 6
    %v786 = vld [vmem:[%s785] ss:$8 sm:$0x3]
    %v787 = vld [vmem:[#allocation5 + $0x80] sm:$0xff]
    %v788 = vld [vmem:[#allocation5 + $0x90] sm:$0xff]
    %v789 = vld [vmem:[#allocation5 + $0xa0] sm:$0xff]
    %v790 = vld [vmem:[#allocation5 + $0xb0] sm:$0xff]
    %v791 = vld [vmem:[#allocation5 + $0xc0] sm:$0xff]
    %v792 = vld [vmem:[#allocation5 + $0xd0] sm:$0xff]
    %v793 = vld [vmem:[#allocation5 + $0xe0] sm:$0xff]
    %v794 = vld [vmem:[#allocation5 + $0xf0] sm:$0xff]
    %v795 = vld [vmem:[#allocation5 + $0x100] sm:$0xff]
    %v796 = vld [vmem:[#allocation5 + $0x110] sm:$0xff]
    %v797 = vld [vmem:[#allocation5 + $0x120] sm:$0xff]
    %v798 = vld [vmem:[#allocation5 + $0x130] sm:$0xff]
    %v799 = vld [vmem:[#allocation5 + $0x140] sm:$0xff]
    %v800 = vld [vmem:[#allocation5 + $0x150] sm:$0xff]
    %v801 = vld [vmem:[#allocation5 + $0x160] sm:$0xff]
    %v802 = vld [vmem:[#allocation5 + $0x170] sm:$0xff]
    %v804 = vlaneseq
    %v805 = vshrl.u32 %v804, 7
    %v806 = vsub.s32 0, %v805
    %v807 = vrot.slane %v786, %v806
    %v808 = vlaneseq
    %v809 = vshrl.u32 %v808, 7
    %v810 = vsub.s32 1, %v809
    %v811 = vrot.slane %v786, %v810
    %v830 = vunpack.c.l.b16 %v787
    %v831 = vunpack.c.h.b16 %v787
    %v832 = vunpack.c.l.b16 %v788
    %v833 = vunpack.c.h.b16 %v788
    %v834 = vunpack.c.l.b16 %v789
    %v835 = vunpack.c.h.b16 %v789
    %v836 = vunpack.c.l.b16 %v790
    %v837 = vunpack.c.h.b16 %v790
    %v838 = vunpack.c.l.b16 %v791
    %v839 = vunpack.c.h.b16 %v791
    %v840 = vunpack.c.l.b16 %v792
    %v841 = vunpack.c.h.b16 %v792
    %v842 = vunpack.c.l.b16 %v793
    %v843 = vunpack.c.h.b16 %v793
    %v844 = vunpack.c.l.b16 %v794
    %v845 = vunpack.c.h.b16 %v794
    %v846 = vunpack.c.l.b16 %v795
    %v847 = vunpack.c.h.b16 %v795
    %v848 = vunpack.c.l.b16 %v796
    %v849 = vunpack.c.h.b16 %v796
    %v850 = vunpack.c.l.b16 %v797
    %v851 = vunpack.c.h.b16 %v797
    %v852 = vunpack.c.l.b16 %v798
    %v853 = vunpack.c.h.b16 %v798
    %v854 = vunpack.c.l.b16 %v799
    %v855 = vunpack.c.h.b16 %v799
    %v856 = vunpack.c.l.b16 %v800
    %v857 = vunpack.c.h.b16 %v800
    %v858 = vunpack.c.l.b16 %v801
    %v859 = vunpack.c.h.b16 %v801
    %v860 = vunpack.c.l.b16 %v802
    %v861 = vunpack.c.h.b16 %v802
    %v862 = vpack.c.b16 %v832, %v830
    %v863 = vpack.c.b16 %v833, %v831
    %v864 = vpack.c.b16 %v836, %v834
    %v865 = vpack.c.b16 %v837, %v835
    %v866 = vpack.c.b16 %v840, %v838
    %v867 = vpack.c.b16 %v841, %v839
    %v868 = vpack.c.b16 %v844, %v842
    %v869 = vpack.c.b16 %v845, %v843
    %v870 = vpack.c.b16 %v848, %v846
    %v871 = vpack.c.b16 %v849, %v847
    %v872 = vpack.c.b16 %v852, %v850
    %v873 = vpack.c.b16 %v853, %v851
    %v874 = vpack.c.b16 %v856, %v854
    %v875 = vpack.c.b16 %v857, %v855
    %v876 = vpack.c.b16 %v860, %v858
    %v877 = vpack.c.b16 %v861, %v859
    %894 = vmatprep.subr.bf16.mxu0 %v877
    %895 = vmatpush1.bf16.msra.mxu0 %v876
    %896 = vmatprep.subr.bf16.mxu0 %v875
    %897 = vmatpush1.bf16.msra.mxu0 %v874
    %898 = vmatprep.subr.bf16.mxu0 %v873
    %899 = vmatpush1.bf16.msra.mxu0 %v872
    %900 = vmatprep.subr.bf16.mxu0 %v871
    %901 = vmatpush1.bf16.msra.mxu0 %v870
    %902 = vmatprep.subr.bf16.mxu0 %v869
    %903 = vmatpush1.bf16.msra.mxu0 %v868
    %904 = vmatprep.subr.bf16.mxu0 %v867
    %905 = vmatpush1.bf16.msra.mxu0 %v866
    %906 = vmatprep.subr.bf16.mxu0 %v865
    %907 = vmatpush1.bf16.msra.mxu0 %v864
    %908 = vmatprep.subr.bf16.mxu0 %v863
    %909 = vmatpush1.bf16.msra.mxu0 %v862
    %910 = vmatprep.subr.bf16.mxu0 0
    %911 = vmatpush2.bf16.msra.mxu0 0
    %912 = vmatprep.subr.bf16.mxu0 0
    %913 = vmatpush2.bf16.msra.mxu0 0
    %914 = vmatprep.subr.bf16.mxu0 0
    %915 = vmatpush2.bf16.msra.mxu0 0
    %916 = vmatprep.subr.bf16.mxu0 0
    %917 = vmatpush2.bf16.msra.mxu0 0
    %918 = vmatprep.subr.bf16.mxu0 0
    %919 = vmatpush2.bf16.msra.mxu0 0
    %920 = vmatprep.subr.bf16.mxu0 0
    %921 = vmatpush2.bf16.msra.mxu0 0
    %922 = vmatprep.subr.bf16.mxu0 0
    %923 = vmatpush2.bf16.msra.mxu0 0
    %924 = vmatprep.subr.bf16.mxu0 0
    %925 = vmatpush2.bf16.msra.mxu0 0
    %926 = vmatprep.mubr.bf16.mxu0 0
    %927 = vmatmul.mubr.bf16.gmra.mxu0 %v784
    %v928 = vpop.f32.mrf.mxu0
    %v929 = vadd.f32 %v807, %v928
    %v930 = vpop.f32.mrf.mxu0
    %v931 = vadd.f32 %v811, %v930
    %v932 = vpop.f32.mrf.mxu0
    %v933 = vpop.f32.mrf.mxu0
    %934 = vdwg.mxu0
    %v935 = vmax.f32 %v929, 0.0
    %v936 = vmax.f32 %v931, 0.0
    %v937 = vpack.c.bf16 %v935, %v935
    %v938 = vpack.c.bf16 %v936, %v936
    %s939 = scalar_lea.vmem [#allocation7], 7
    %v940 = vld [vmem:[%s939] ss:$8 sm:$0xf]
    %v941 = vld [vmem:[#allocation5 + $0x180] sm:$0xff]
    %v942 = vld [vmem:[#allocation5 + $0x188] sm:$0xff]
    %v943 = vld [vmem:[#allocation5 + $0x190] sm:$0xff]
    %v944 = vld [vmem:[#allocation5 + $0x198] sm:$0xff]
    %v945 = vld [vmem:[#allocation5 + $0x1a0] sm:$0xff]
    %v946 = vld [vmem:[#allocation5 + $0x1a8] sm:$0xff]
    %v947 = vld [vmem:[#allocation5 + $0x1b0] sm:$0xff]
    %v948 = vld [vmem:[#allocation5 + $0x1b8] sm:$0xff]
    %v949 = vld [vmem:[#allocation5 + $0x1c0] sm:$0xff]
    %v950 = vld [vmem:[#allocation5 + $0x1c8] sm:$0xff]
    %v951 = vld [vmem:[#allocation5 + $0x1d0] sm:$0xff]
    %v952 = vld [vmem:[#allocation5 + $0x1d8] sm:$0xff]
    %v953 = vld [vmem:[#allocation5 + $0x1e0] sm:$0xff]
    %v954 = vld [vmem:[#allocation5 + $0x1e8] sm:$0xff]
    %v955 = vld [vmem:[#allocation5 + $0x1f0] sm:$0xff]
    %v956 = vld [vmem:[#allocation5 + $0x1f8] sm:$0xff]
    %v957 = vld [vmem:[#allocation5 + $0x200] sm:$0xff]
    %v958 = vld [vmem:[#allocation5 + $0x208] sm:$0xff]
    %v959 = vld [vmem:[#allocation5 + $0x210] sm:$0xff]
    %v960 = vld [vmem:[#allocation5 + $0x218] sm:$0xff]
    %v961 = vld [vmem:[#allocation5 + $0x220] sm:$0xff]
    %v962 = vld [vmem:[#allocation5 + $0x228] sm:$0xff]
    %v963 = vld [vmem:[#allocation5 + $0x230] sm:$0xff]
    %v964 = vld [vmem:[#allocation5 + $0x238] sm:$0xff]
    %v965 = vld [vmem:[#allocation5 + $0x240] sm:$0xff]
    %v966 = vld [vmem:[#allocation5 + $0x248] sm:$0xff]
    %v967 = vld [vmem:[#allocation5 + $0x250] sm:$0xff]
    %v968 = vld [vmem:[#allocation5 + $0x258] sm:$0xff]
    %v969 = vld [vmem:[#allocation5 + $0x260] sm:$0xff]
    %v970 = vld [vmem:[#allocation5 + $0x268] sm:$0xff]
    %v971 = vld [vmem:[#allocation5 + $0x270] sm:$0xff]
    %v972 = vld [vmem:[#allocation5 + $0x278] sm:$0xff]
    %v973 = vld [vmem:[#allocation5 + $0x280] sm:$0xff]
    %v974 = vld [vmem:[#allocation5 + $0x288] sm:$0xff]
    %v975 = vld [vmem:[#allocation5 + $0x290] sm:$0xff]
    %v976 = vld [vmem:[#allocation5 + $0x298] sm:$0xff]
    %v977 = vld [vmem:[#allocation5 + $0x2a0] sm:$0xff]
    %v978 = vld [vmem:[#allocation5 + $0x2a8] sm:$0xff]
    %v979 = vld [vmem:[#allocation5 + $0x2b0] sm:$0xff]
    %v980 = vld [vmem:[#allocation5 + $0x2b8] sm:$0xff]
    %v981 = vld [vmem:[#allocation5 + $0x2c0] sm:$0xff]
    %v982 = vld [vmem:[#allocation5 + $0x2c8] sm:$0xff]
    %v983 = vld [vmem:[#allocation5 + $0x2d0] sm:$0xff]
    %v984 = vld [vmem:[#allocation5 + $0x2d8] sm:$0xff]
    %v985 = vld [vmem:[#allocation5 + $0x2e0] sm:$0xff]
    %v986 = vld [vmem:[#allocation5 + $0x2e8] sm:$0xff]
    %v987 = vld [vmem:[#allocation5 + $0x2f0] sm:$0xff]
    %v988 = vld [vmem:[#allocation5 + $0x2f8] sm:$0xff]
    %v989 = vld [vmem:[#allocation5 + $0x300] sm:$0xff]
    %v990 = vld [vmem:[#allocation5 + $0x308] sm:$0xff]
    %v991 = vld [vmem:[#allocation5 + $0x310] sm:$0xff]
    %v992 = vld [vmem:[#allocation5 + $0x318] sm:$0xff]
    %v993 = vld [vmem:[#allocation5 + $0x320] sm:$0xff]
    %v994 = vld [vmem:[#allocation5 + $0x328] sm:$0xff]
    %v995 = vld [vmem:[#allocation5 + $0x330] sm:$0xff]
    %v996 = vld [vmem:[#allocation5 + $0x338] sm:$0xff]
    %v997 = vld [vmem:[#allocation5 + $0x340] sm:$0xff]
    %v998 = vld [vmem:[#allocation5 + $0x348] sm:$0xff]
    %v999 = vld [vmem:[#allocation5 + $0x350] sm:$0xff]
    %v1000 = vld [vmem:[#allocation5 + $0x358] sm:$0xff]
    %v1001 = vld [vmem:[#allocation5 + $0x360] sm:$0xff]
    %v1002 = vld [vmem:[#allocation5 + $0x368] sm:$0xff]
    %v1003 = vld [vmem:[#allocation5 + $0x370] sm:$0xff]
    %v1004 = vld [vmem:[#allocation5 + $0x378] sm:$0xff]
    %v1006 = vlaneseq
    %v1007 = vshrl.u32 %v1006, 7
    %v1008 = vsub.s32 0, %v1007
    %v1009 = vrot.slane %v940, %v1008
    %v1010 = vlaneseq
    %v1011 = vshrl.u32 %v1010, 7
    %v1012 = vsub.s32 1, %v1011
    %v1013 = vrot.slane %v940, %v1012
    %v1014 = vlaneseq
    %v1015 = vshrl.u32 %v1014, 7
    %v1016 = vsub.s32 2, %v1015
    %v1017 = vrot.slane %v940, %v1016
    %v1018 = vlaneseq
    %v1019 = vshrl.u32 %v1018, 7
    %v1020 = vsub.s32 3, %v1019
    %v1021 = vrot.slane %v940, %v1020
    %v1090 = vunpack.c.l.b16 %v941
    %v1091 = vunpack.c.h.b16 %v941
    %v1092 = vunpack.c.l.b16 %v942
    %v1093 = vunpack.c.h.b16 %v942
    %v1094 = vunpack.c.l.b16 %v943
    %v1095 = vunpack.c.h.b16 %v943
    %v1096 = vunpack.c.l.b16 %v944
    %v1097 = vunpack.c.h.b16 %v944
    %v1098 = vunpack.c.l.b16 %v945
    %v1099 = vunpack.c.h.b16 %v945
    %v1100 = vunpack.c.l.b16 %v946
    %v1101 = vunpack.c.h.b16 %v946
    %v1102 = vunpack.c.l.b16 %v947
    %v1103 = vunpack.c.h.b16 %v947
    %v1104 = vunpack.c.l.b16 %v948
    %v1105 = vunpack.c.h.b16 %v948
    %v1106 = vunpack.c.l.b16 %v949
    %v1107 = vunpack.c.h.b16 %v949
    %v1108 = vunpack.c.l.b16 %v950
    %v1109 = vunpack.c.h.b16 %v950
    %v1110 = vunpack.c.l.b16 %v951
    %v1111 = vunpack.c.h.b16 %v951
    %v1112 = vunpack.c.l.b16 %v952
    %v1113 = vunpack.c.h.b16 %v952
    %v1114 = vunpack.c.l.b16 %v953
    %v1115 = vunpack.c.h.b16 %v953
    %v1116 = vunpack.c.l.b16 %v954
    %v1117 = vunpack.c.h.b16 %v954
    %v1118 = vunpack.c.l.b16 %v955
    %v1119 = vunpack.c.h.b16 %v955
    %v1120 = vunpack.c.l.b16 %v956
    %v1121 = vunpack.c.h.b16 %v956
    %v1122 = vunpack.c.l.b16 %v957
    %v1123 = vunpack.c.h.b16 %v957
    %v1124 = vunpack.c.l.b16 %v958
    %v1125 = vunpack.c.h.b16 %v958
    %v1126 = vunpack.c.l.b16 %v959
    %v1127 = vunpack.c.h.b16 %v959
    %v1128 = vunpack.c.l.b16 %v960
    %v1129 = vunpack.c.h.b16 %v960
    %v1130 = vunpack.c.l.b16 %v961
    %v1131 = vunpack.c.h.b16 %v961
    %v1132 = vunpack.c.l.b16 %v962
    %v1133 = vunpack.c.h.b16 %v962
    %v1134 = vunpack.c.l.b16 %v963
    %v1135 = vunpack.c.h.b16 %v963
    %v1136 = vunpack.c.l.b16 %v964
    %v1137 = vunpack.c.h.b16 %v964
    %v1138 = vunpack.c.l.b16 %v965
    %v1139 = vunpack.c.h.b16 %v965
    %v1140 = vunpack.c.l.b16 %v966
    %v1141 = vunpack.c.h.b16 %v966
    %v1142 = vunpack.c.l.b16 %v967
    %v1143 = vunpack.c.h.b16 %v967
    %v1144 = vunpack.c.l.b16 %v968
    %v1145 = vunpack.c.h.b16 %v968
    %v1146 = vunpack.c.l.b16 %v969
    %v1147 = vunpack.c.h.b16 %v969
    %v1148 = vunpack.c.l.b16 %v970
    %v1149 = vunpack.c.h.b16 %v970
    %v1150 = vunpack.c.l.b16 %v971
    %v1151 = vunpack.c.h.b16 %v971
    %v1152 = vunpack.c.l.b16 %v972
    %v1153 = vunpack.c.h.b16 %v972
    %v1154 = vunpack.c.l.b16 %v973
    %v1155 = vunpack.c.h.b16 %v973
    %v1156 = vunpack.c.l.b16 %v974
    %v1157 = vunpack.c.h.b16 %v974
    %v1158 = vunpack.c.l.b16 %v975
    %v1159 = vunpack.c.h.b16 %v975
    %v1160 = vunpack.c.l.b16 %v976
    %v1161 = vunpack.c.h.b16 %v976
    %v1162 = vunpack.c.l.b16 %v977
    %v1163 = vunpack.c.h.b16 %v977
    %v1164 = vunpack.c.l.b16 %v978
    %v1165 = vunpack.c.h.b16 %v978
    %v1166 = vunpack.c.l.b16 %v979
    %v1167 = vunpack.c.h.b16 %v979
    %v1168 = vunpack.c.l.b16 %v980
    %v1169 = vunpack.c.h.b16 %v980
    %v1170 = vunpack.c.l.b16 %v981
    %v1171 = vunpack.c.h.b16 %v981
    %v1172 = vunpack.c.l.b16 %v982
    %v1173 = vunpack.c.h.b16 %v982
    %v1174 = vunpack.c.l.b16 %v983
    %v1175 = vunpack.c.h.b16 %v983
    %v1176 = vunpack.c.l.b16 %v984
    %v1177 = vunpack.c.h.b16 %v984
    %v1178 = vunpack.c.l.b16 %v985
    %v1179 = vunpack.c.h.b16 %v985
    %v1180 = vunpack.c.l.b16 %v986
    %v1181 = vunpack.c.h.b16 %v986
    %v1182 = vunpack.c.l.b16 %v987
    %v1183 = vunpack.c.h.b16 %v987
    %v1184 = vunpack.c.l.b16 %v988
    %v1185 = vunpack.c.h.b16 %v988
    %v1186 = vunpack.c.l.b16 %v989
    %v1187 = vunpack.c.h.b16 %v989
    %v1188 = vunpack.c.l.b16 %v990
    %v1189 = vunpack.c.h.b16 %v990
    %v1190 = vunpack.c.l.b16 %v991
    %v1191 = vunpack.c.h.b16 %v991
    %v1192 = vunpack.c.l.b16 %v992
    %v1193 = vunpack.c.h.b16 %v992
    %v1194 = vunpack.c.l.b16 %v993
    %v1195 = vunpack.c.h.b16 %v993
    %v1196 = vunpack.c.l.b16 %v994
    %v1197 = vunpack.c.h.b16 %v994
    %v1198 = vunpack.c.l.b16 %v995
    %v1199 = vunpack.c.h.b16 %v995
    %v1200 = vunpack.c.l.b16 %v996
    %v1201 = vunpack.c.h.b16 %v996
    %v1202 = vunpack.c.l.b16 %v997
    %v1203 = vunpack.c.h.b16 %v997
    %v1204 = vunpack.c.l.b16 %v998
    %v1205 = vunpack.c.h.b16 %v998
    %v1206 = vunpack.c.l.b16 %v999
    %v1207 = vunpack.c.h.b16 %v999
    %v1208 = vunpack.c.l.b16 %v1000
    %v1209 = vunpack.c.h.b16 %v1000
    %v1210 = vunpack.c.l.b16 %v1001
    %v1211 = vunpack.c.h.b16 %v1001
    %v1212 = vunpack.c.l.b16 %v1002
    %v1213 = vunpack.c.h.b16 %v1002
    %v1214 = vunpack.c.l.b16 %v1003
    %v1215 = vunpack.c.h.b16 %v1003
    %v1216 = vunpack.c.l.b16 %v1004
    %v1217 = vunpack.c.h.b16 %v1004
    %v1218 = vpack.c.b16 %v1094, %v1090
    %v1219 = vpack.c.b16 %v1095, %v1091
    %v1220 = vpack.c.b16 %v1096, %v1092
    %v1221 = vpack.c.b16 %v1097, %v1093
    %v1222 = vpack.c.b16 %v1102, %v1098
    %v1223 = vpack.c.b16 %v1103, %v1099
    %v1224 = vpack.c.b16 %v1104, %v1100
    %v1225 = vpack.c.b16 %v1105, %v1101
    %v1226 = vpack.c.b16 %v1110, %v1106
    %v1227 = vpack.c.b16 %v1111, %v1107
    %v1228 = vpack.c.b16 %v1112, %v1108
    %v1229 = vpack.c.b16 %v1113, %v1109
    %v1230 = vpack.c.b16 %v1118, %v1114
    %v1231 = vpack.c.b16 %v1119, %v1115
    %v1232 = vpack.c.b16 %v1120, %v1116
    %v1233 = vpack.c.b16 %v1121, %v1117
    %v1234 = vpack.c.b16 %v1126, %v1122
    %v1235 = vpack.c.b16 %v1127, %v1123
    %v1236 = vpack.c.b16 %v1128, %v1124
    %v1237 = vpack.c.b16 %v1129, %v1125
    %v1238 = vpack.c.b16 %v1134, %v1130
    %v1239 = vpack.c.b16 %v1135, %v1131
    %v1240 = vpack.c.b16 %v1136, %v1132
    %v1241 = vpack.c.b16 %v1137, %v1133
    %v1242 = vpack.c.b16 %v1142, %v1138
    %v1243 = vpack.c.b16 %v1143, %v1139
    %v1244 = vpack.c.b16 %v1144, %v1140
    %v1245 = vpack.c.b16 %v1145, %v1141
    %v1246 = vpack.c.b16 %v1150, %v1146
    %v1247 = vpack.c.b16 %v1151, %v1147
    %v1248 = vpack.c.b16 %v1152, %v1148
    %v1249 = vpack.c.b16 %v1153, %v1149
    %v1250 = vpack.c.b16 %v1158, %v1154
    %v1251 = vpack.c.b16 %v1159, %v1155
    %v1252 = vpack.c.b16 %v1160, %v1156
    %v1253 = vpack.c.b16 %v1161, %v1157
    %v1254 = vpack.c.b16 %v1166, %v1162
    %v1255 = vpack.c.b16 %v1167, %v1163
    %v1256 = vpack.c.b16 %v1168, %v1164
    %v1257 = vpack.c.b16 %v1169, %v1165
    %v1258 = vpack.c.b16 %v1174, %v1170
    %v1259 = vpack.c.b16 %v1175, %v1171
    %v1260 = vpack.c.b16 %v1176, %v1172
    %v1261 = vpack.c.b16 %v1177, %v1173
    %v1262 = vpack.c.b16 %v1182, %v1178
    %v1263 = vpack.c.b16 %v1183, %v1179
    %v1264 = vpack.c.b16 %v1184, %v1180
    %v1265 = vpack.c.b16 %v1185, %v1181
    %v1266 = vpack.c.b16 %v1190, %v1186
    %v1267 = vpack.c.b16 %v1191, %v1187
    %v1268 = vpack.c.b16 %v1192, %v1188
    %v1269 = vpack.c.b16 %v1193, %v1189
    %v1270 = vpack.c.b16 %v1198, %v1194
    %v1271 = vpack.c.b16 %v1199, %v1195
    %v1272 = vpack.c.b16 %v1200, %v1196
    %v1273 = vpack.c.b16 %v1201, %v1197
    %v1274 = vpack.c.b16 %v1206, %v1202
    %v1275 = vpack.c.b16 %v1207, %v1203
    %v1276 = vpack.c.b16 %v1208, %v1204
    %v1277 = vpack.c.b16 %v1209, %v1205
    %v1278 = vpack.c.b16 %v1214, %v1210
    %v1279 = vpack.c.b16 %v1215, %v1211
    %v1280 = vpack.c.b16 %v1216, %v1212
    %v1281 = vpack.c.b16 %v1217, %v1213
    %1346 = vmatprep.subr.bf16.mxu0 %v1247
    %1347 = vmatpush1.bf16.msra.mxu0 %v1246
    %1348 = vmatprep.subr.bf16.mxu0 %v1243
    %1349 = vmatpush1.bf16.msra.mxu0 %v1242
    %1350 = vmatprep.subr.bf16.mxu0 %v1239
    %1351 = vmatpush1.bf16.msra.mxu0 %v1238
    %1352 = vmatprep.subr.bf16.mxu0 %v1235
    %1353 = vmatpush1.bf16.msra.mxu0 %v1234
    %1354 = vmatprep.subr.bf16.mxu0 %v1231
    %1355 = vmatpush1.bf16.msra.mxu0 %v1230
    %1356 = vmatprep.subr.bf16.mxu0 %v1227
    %1357 = vmatpush1.bf16.msra.mxu0 %v1226
    %1358 = vmatprep.subr.bf16.mxu0 %v1223
    %1359 = vmatpush1.bf16.msra.mxu0 %v1222
    %1360 = vmatprep.subr.bf16.mxu0 %v1219
    %1361 = vmatpush1.bf16.msra.mxu0 %v1218
    %1362 = vmatprep.subr.bf16.mxu0 %v1279
    %1363 = vmatpush2.bf16.msra.mxu0 %v1278
    %1364 = vmatprep.subr.bf16.mxu0 %v1275
    %1365 = vmatpush2.bf16.msra.mxu0 %v1274
    %1366 = vmatprep.subr.bf16.mxu0 %v1271
    %1367 = vmatpush2.bf16.msra.mxu0 %v1270
    %1368 = vmatprep.subr.bf16.mxu0 %v1267
    %1369 = vmatpush2.bf16.msra.mxu0 %v1266
    %1370 = vmatprep.subr.bf16.mxu0 %v1263
    %1371 = vmatpush2.bf16.msra.mxu0 %v1262
    %1372 = vmatprep.subr.bf16.mxu0 %v1259
    %1373 = vmatpush2.bf16.msra.mxu0 %v1258
    %1374 = vmatprep.subr.bf16.mxu0 %v1255
    %1375 = vmatpush2.bf16.msra.mxu0 %v1254
    %1376 = vmatprep.subr.bf16.mxu0 %v1251
    %1377 = vmatpush2.bf16.msra.mxu0 %v1250
    %1378 = vmatprep.mubr.bf16.mxu0 %v938
    %1379 = vmatmul.mubr.bf16.gmra.mxu0 %v937
    %v1380 = vpop.f32.mrf.mxu0
    %v1381 = vadd.f32 %v1009, %v1380
    %v1382 = vpop.f32.mrf.mxu0
    %v1383 = vadd.f32 %v1013, %v1382
    %v1384 = vpop.f32.mrf.mxu0
    %v1385 = vpop.f32.mrf.mxu0
    %1386 = vdwg.mxu0
    %1387 = vmatprep.subr.bf16.mxu0 %v1249
    %1388 = vmatpush1.bf16.msra.mxu0 %v1248
    %1389 = vmatprep.subr.bf16.mxu0 %v1245
    %1390 = vmatpush1.bf16.msra.mxu0 %v1244
    %1391 = vmatprep.subr.bf16.mxu0 %v1241
    %1392 = vmatpush1.bf16.msra.mxu0 %v1240
    %1393 = vmatprep.subr.bf16.mxu0 %v1237
    %1394 = vmatpush1.bf16.msra.mxu0 %v1236
    %1395 = vmatprep.subr.bf16.mxu0 %v1233
    %1396 = vmatpush1.bf16.msra.mxu0 %v1232
    %1397 = vmatprep.subr.bf16.mxu0 %v1229
    %1398 = vmatpush1.bf16.msra.mxu0 %v1228
    %1399 = vmatprep.subr.bf16.mxu0 %v1225
    %1400 = vmatpush1.bf16.msra.mxu0 %v1224
    %1401 = vmatprep.subr.bf16.mxu0 %v1221
    %1402 = vmatpush1.bf16.msra.mxu0 %v1220
    %1403 = vmatprep.subr.bf16.mxu0 %v1281
    %1404 = vmatpush2.bf16.msra.mxu0 %v1280
    %1405 = vmatprep.subr.bf16.mxu0 %v1277
    %1406 = vmatpush2.bf16.msra.mxu0 %v1276
    %1407 = vmatprep.subr.bf16.mxu0 %v1273
    %1408 = vmatpush2.bf16.msra.mxu0 %v1272
    %1409 = vmatprep.subr.bf16.mxu0 %v1269
    %1410 = vmatpush2.bf16.msra.mxu0 %v1268
    %1411 = vmatprep.subr.bf16.mxu0 %v1265
    %1412 = vmatpush2.bf16.msra.mxu0 %v1264
    %1413 = vmatprep.subr.bf16.mxu0 %v1261
    %1414 = vmatpush2.bf16.msra.mxu0 %v1260
    %1415 = vmatprep.subr.bf16.mxu0 %v1257
    %1416 = vmatpush2.bf16.msra.mxu0 %v1256
    %1417 = vmatprep.subr.bf16.mxu0 %v1253
    %1418 = vmatpush2.bf16.msra.mxu0 %v1252
    %1419 = vmatprep.mubr.bf16.mxu0 %v938
    %1420 = vmatmul.mubr.bf16.gmra.mxu0 %v937
    %v1421 = vpop.f32.mrf.mxu0
    %v1422 = vadd.f32 %v1017, %v1421
    %v1423 = vpop.f32.mrf.mxu0
    %v1424 = vadd.f32 %v1021, %v1423
    %v1425 = vpop.f32.mrf.mxu0
    %v1426 = vpop.f32.mrf.mxu0
    %1427 = vdwg.mxu0
    %v1428 = vmax.f32 %v1381, 0.0
    %v1429 = vmax.f32 %v1383, 0.0
    %v1430 = vmax.f32 %v1422, 0.0
    %v1431 = vmax.f32 %v1424, 0.0
    %v1432 = vpack.c.bf16 %v1428, %v1428
    %v1433 = vpack.c.bf16 %v1429, %v1429
    %v1434 = vpack.c.bf16 %v1430, %v1430
    %v1435 = vpack.c.bf16 %v1431, %v1431
    %v1436 = vld [vmem:[#allocation7 + $0x20] ss:$0 sm:$0xff]
    %v1437 = vld [vmem:[#allocation2 + $0x48] sm:$0xff]
    %v1438 = vld [vmem:[#allocation2 + $0x50] sm:$0xff]
    %v1439 = vld [vmem:[#allocation2 + $0x58] sm:$0xff]
    %v1440 = vld [vmem:[#allocation2 + $0x60] sm:$0xff]
    %v1441 = vld [vmem:[#allocation2 + $0x68] sm:$0xff]
    %v1442 = vld [vmem:[#allocation2 + $0x70] sm:$0xff]
    %v1443 = vld [vmem:[#allocation2 + $0x78] sm:$0xff]
    %v1444 = vld [vmem:[#allocation2 + $0x80] sm:$0xff]
    %v1445 = vld [vmem:[#allocation2 + $0x88] sm:$0xff]
    %v1446 = vld [vmem:[#allocation2 + $0x90] sm:$0xff]
    %v1447 = vld [vmem:[#allocation2 + $0x98] sm:$0xff]
    %v1448 = vld [vmem:[#allocation2 + $0xa0] sm:$0xff]
    %v1449 = vld [vmem:[#allocation2 + $0xa8] sm:$0xff]
    %v1450 = vld [vmem:[#allocation2 + $0xb0] sm:$0xff]
    %v1451 = vld [vmem:[#allocation2 + $0xb8] sm:$0xff]
    %v1452 = vld [vmem:[#allocation2 + $0xc0] sm:$0xff]
    %v1453 = vld [vmem:[#allocation2 + $0xc8] sm:$0xff]
    %v1454 = vld [vmem:[#allocation2 + $0xd0] sm:$0xff]
    %v1455 = vld [vmem:[#allocation2 + $0xd8] sm:$0xff]
    %v1456 = vld [vmem:[#allocation2 + $0xe0] sm:$0xff]
    %v1457 = vld [vmem:[#allocation2 + $0xe8] sm:$0xff]
    %v1458 = vld [vmem:[#allocation2 + $0xf0] sm:$0xff]
    %v1459 = vld [vmem:[#allocation2 + $0xf8] sm:$0xff]
    %v1460 = vld [vmem:[#allocation2 + $0x100] sm:$0xff]
    %v1461 = vld [vmem:[#allocation2 + $0x108] sm:$0xff]
    %v1462 = vld [vmem:[#allocation2 + $0x110] sm:$0xff]
    %v1463 = vld [vmem:[#allocation2 + $0x118] sm:$0xff]
    %v1464 = vld [vmem:[#allocation2 + $0x120] sm:$0xff]
    %v1465 = vld [vmem:[#allocation2 + $0x128] sm:$0xff]
    %v1466 = vld [vmem:[#allocation2 + $0x130] sm:$0xff]
    %v1467 = vld [vmem:[#allocation2 + $0x138] sm:$0xff]
    %v1468 = vld [vmem:[#allocation2 + $0x140] sm:$0xff]
    %v1469 = vld [vmem:[#allocation2 + $0x148] sm:$0xff]
    %v1470 = vld [vmem:[#allocation2 + $0x150] sm:$0xff]
    %v1471 = vld [vmem:[#allocation2 + $0x158] sm:$0xff]
    %v1472 = vld [vmem:[#allocation2 + $0x160] sm:$0xff]
    %v1473 = vld [vmem:[#allocation2 + $0x168] sm:$0xff]
    %v1474 = vld [vmem:[#allocation2 + $0x170] sm:$0xff]
    %v1475 = vld [vmem:[#allocation2 + $0x178] sm:$0xff]
    %v1476 = vld [vmem:[#allocation2 + $0x180] sm:$0xff]
    %v1477 = vld [vmem:[#allocation2 + $0x188] sm:$0xff]
    %v1478 = vld [vmem:[#allocation2 + $0x190] sm:$0xff]
    %v1479 = vld [vmem:[#allocation2 + $0x198] sm:$0xff]
    %v1480 = vld [vmem:[#allocation2 + $0x1a0] sm:$0xff]
    %v1481 = vld [vmem:[#allocation2 + $0x1a8] sm:$0xff]
    %v1482 = vld [vmem:[#allocation2 + $0x1b0] sm:$0xff]
    %v1483 = vld [vmem:[#allocation2 + $0x1b8] sm:$0xff]
    %v1484 = vld [vmem:[#allocation2 + $0x1c0] sm:$0xff]
    %v1485 = vld [vmem:[#allocation2 + $0x1c8] sm:$0xff]
    %v1486 = vld [vmem:[#allocation2 + $0x1d0] sm:$0xff]
    %v1487 = vld [vmem:[#allocation2 + $0x1d8] sm:$0xff]
    %v1488 = vld [vmem:[#allocation2 + $0x1e0] sm:$0xff]
    %v1489 = vld [vmem:[#allocation2 + $0x1e8] sm:$0xff]
    %v1490 = vld [vmem:[#allocation2 + $0x1f0] sm:$0xff]
    %v1491 = vld [vmem:[#allocation2 + $0x1f8] sm:$0xff]
    %v1492 = vld [vmem:[#allocation2 + $0x200] sm:$0xff]
    %v1493 = vld [vmem:[#allocation2 + $0x208] sm:$0xff]
    %v1494 = vld [vmem:[#allocation2 + $0x210] sm:$0xff]
    %v1495 = vld [vmem:[#allocation2 + $0x218] sm:$0xff]
    %v1496 = vld [vmem:[#allocation2 + $0x220] sm:$0xff]
    %v1497 = vld [vmem:[#allocation2 + $0x228] sm:$0xff]
    %v1498 = vld [vmem:[#allocation2 + $0x230] sm:$0xff]
    %v1499 = vld [vmem:[#allocation2 + $0x238] sm:$0xff]
    %v1500 = vld [vmem:[#allocation2 + $0x240] sm:$0xff]
    %v1501 = vunpack.c.l.bf16 %v1432
    %v1502 = vunpack.c.l.bf16 %v1433
    %v1503 = vunpack.c.l.bf16 %v1434
    %v1504 = vunpack.c.l.bf16 %v1435
    %1505 = vmatprep.subr.mxu0 0.0
    %1506 = vmatpush1.msra.mxu0 %v1452
    %1507 = vmatprep.subr.mxu0 0.0
    %1508 = vmatpush1.msra.mxu0 %v1451
    %1509 = vmatprep.subr.mxu0 0.0
    %1510 = vmatpush1.msra.mxu0 %v1450
    %1511 = vmatprep.subr.mxu0 0.0
    %1512 = vmatpush1.msra.mxu0 %v1449
    %1513 = vmatprep.subr.mxu0 0.0
    %1514 = vmatpush1.msra.mxu0 %v1448
    %1515 = vmatprep.subr.mxu0 0.0
    %1516 = vmatpush1.msra.mxu0 %v1447
    %1517 = vmatprep.subr.mxu0 0.0
    %1518 = vmatpush1.msra.mxu0 %v1446
    %1519 = vmatprep.subr.mxu0 0.0
    %1520 = vmatpush1.msra.mxu0 %v1445
    %1521 = vmatprep.subr.mxu0 0.0
    %1522 = vmatpush1.msra.mxu0 %v1444
    %1523 = vmatprep.subr.mxu0 0.0
    %1524 = vmatpush1.msra.mxu0 %v1443
    %1525 = vmatprep.subr.mxu0 0.0
    %1526 = vmatpush1.msra.mxu0 %v1442
    %1527 = vmatprep.subr.mxu0 0.0
    %1528 = vmatpush1.msra.mxu0 %v1441
    %1529 = vmatprep.subr.mxu0 0.0
    %1530 = vmatpush1.msra.mxu0 %v1440
    %1531 = vmatprep.subr.mxu0 0.0
    %1532 = vmatpush1.msra.mxu0 %v1439
    %1533 = vmatprep.subr.mxu0 0.0
    %1534 = vmatpush1.msra.mxu0 %v1438
    %1535 = vmatprep.subr.mxu0 0.0
    %1536 = vmatpush1.msra.mxu0 %v1437
    %1537 = vmatprep.subr.mxu0 0.0
    %1538 = vmatpush2.msra.mxu0 %v1468
    %1539 = vmatprep.subr.mxu0 0.0
    %1540 = vmatpush2.msra.mxu0 %v1467
    %1541 = vmatprep.subr.mxu0 0.0
    %1542 = vmatpush2.msra.mxu0 %v1466
    %1543 = vmatprep.subr.mxu0 0.0
    %1544 = vmatpush2.msra.mxu0 %v1465
    %1545 = vmatprep.subr.mxu0 0.0
    %1546 = vmatpush2.msra.mxu0 %v1464
    %1547 = vmatprep.subr.mxu0 0.0
    %1548 = vmatpush2.msra.mxu0 %v1463
    %1549 = vmatprep.subr.mxu0 0.0
    %1550 = vmatpush2.msra.mxu0 %v1462
    %1551 = vmatprep.subr.mxu0 0.0
    %1552 = vmatpush2.msra.mxu0 %v1461
    %1553 = vmatprep.subr.mxu0 0.0
    %1554 = vmatpush2.msra.mxu0 %v1460
    %1555 = vmatprep.subr.mxu0 0.0
    %1556 = vmatpush2.msra.mxu0 %v1459
    %1557 = vmatprep.subr.mxu0 0.0
    %1558 = vmatpush2.msra.mxu0 %v1458
    %1559 = vmatprep.subr.mxu0 0.0
    %1560 = vmatpush2.msra.mxu0 %v1457
    %1561 = vmatprep.subr.mxu0 0.0
    %1562 = vmatpush2.msra.mxu0 %v1456
    %1563 = vmatprep.subr.mxu0 0.0
    %1564 = vmatpush2.msra.mxu0 %v1455
    %1565 = vmatprep.subr.mxu0 0.0
    %1566 = vmatpush2.msra.mxu0 %v1454
    %1567 = vmatprep.subr.mxu0 0.0
    %1568 = vmatpush2.msra.mxu0 %v1453
    %1569 = vmatprep.mubr.f32.mxu0 %v1502
    %1570 = vmatmul.mubr.f32.gmra.mxu0 %v1501
    %v1571 = vpop.f32.mrf.mxu0
    %v1572 = vadd.f32 %v1436, %v1571
    %v1573 = vpop.f32.mrf.mxu0
    %1574 = vdwg.mxu0
    %1575 = vmatprep.subr.mxu0 0.0
    %1576 = vmatpush1.msra.mxu0 %v1484
    %1577 = vmatprep.subr.mxu0 0.0
    %1578 = vmatpush1.msra.mxu0 %v1483
    %1579 = vmatprep.subr.mxu0 0.0
    %1580 = vmatpush1.msra.mxu0 %v1482
    %1581 = vmatprep.subr.mxu0 0.0
    %1582 = vmatpush1.msra.mxu0 %v1481
    %1583 = vmatprep.subr.mxu0 0.0
    %1584 = vmatpush1.msra.mxu0 %v1480
    %1585 = vmatprep.subr.mxu0 0.0
    %1586 = vmatpush1.msra.mxu0 %v1479
    %1587 = vmatprep.subr.mxu0 0.0
    %1588 = vmatpush1.msra.mxu0 %v1478
    %1589 = vmatprep.subr.mxu0 0.0
    %1590 = vmatpush1.msra.mxu0 %v1477
    %1591 = vmatprep.subr.mxu0 0.0
    %1592 = vmatpush1.msra.mxu0 %v1476
    %1593 = vmatprep.subr.mxu0 0.0
    %1594 = vmatpush1.msra.mxu0 %v1475
    %1595 = vmatprep.subr.mxu0 0.0
    %1596 = vmatpush1.msra.mxu0 %v1474
    %1597 = vmatprep.subr.mxu0 0.0
    %1598 = vmatpush1.msra.mxu0 %v1473
    %1599 = vmatprep.subr.mxu0 0.0
    %1600 = vmatpush1.msra.mxu0 %v1472
    %1601 = vmatprep.subr.mxu0 0.0
    %1602 = vmatpush1.msra.mxu0 %v1471
    %1603 = vmatprep.subr.mxu0 0.0
    %1604 = vmatpush1.msra.mxu0 %v1470
    %1605 = vmatprep.subr.mxu0 0.0
    %1606 = vmatpush1.msra.mxu0 %v1469
    %1607 = vmatprep.subr.mxu0 0.0
    %1608 = vmatpush2.msra.mxu0 %v1500
    %1609 = vmatprep.subr.mxu0 0.0
    %1610 = vmatpush2.msra.mxu0 %v1499
    %1611 = vmatprep.subr.mxu0 0.0
    %1612 = vmatpush2.msra.mxu0 %v1498
    %1613 = vmatprep.subr.mxu0 0.0
    %1614 = vmatpush2.msra.mxu0 %v1497
    %1615 = vmatprep.subr.mxu0 0.0
    %1616 = vmatpush2.msra.mxu0 %v1496
    %1617 = vmatprep.subr.mxu0 0.0
    %1618 = vmatpush2.msra.mxu0 %v1495
    %1619 = vmatprep.subr.mxu0 0.0
    %1620 = vmatpush2.msra.mxu0 %v1494
    %1621 = vmatprep.subr.mxu0 0.0
    %1622 = vmatpush2.msra.mxu0 %v1493
    %1623 = vmatprep.subr.mxu0 0.0
    %1624 = vmatpush2.msra.mxu0 %v1492
    %1625 = vmatprep.subr.mxu0 0.0
    %1626 = vmatpush2.msra.mxu0 %v1491
    %1627 = vmatprep.subr.mxu0 0.0
    %1628 = vmatpush2.msra.mxu0 %v1490
    %1629 = vmatprep.subr.mxu0 0.0
    %1630 = vmatpush2.msra.mxu0 %v1489
    %1631 = vmatprep.subr.mxu0 0.0
    %1632 = vmatpush2.msra.mxu0 %v1488
    %1633 = vmatprep.subr.mxu0 0.0
    %1634 = vmatpush2.msra.mxu0 %v1487
    %1635 = vmatprep.subr.mxu0 0.0
    %1636 = vmatpush2.msra.mxu0 %v1486
    %1637 = vmatprep.subr.mxu0 0.0
    %1638 = vmatpush2.msra.mxu0 %v1485
    %1639 = vmatprep.mubr.f32.mxu0 %v1504
    %1640 = vmatmul.mubr.f32.gmra.mxu0 %v1503
    %v1641 = vpop.f32.mrf.mxu0
    %v1642 = vadd.f32 %v1572, %v1641
    %v1643 = vpop.f32.mrf.mxu0
    %1644 = vdwg.mxu0
    %1645 = vst [vmem:[#allocation8] sm:$0xff] %v1642
    // Predicated region
    $region30: #{tpu_custom_call.1} parent=1 // pred_check
      _
    $region31: #{tpu_custom_call.1} parent=1 // pred_check_branch
      %1647 = sbr.rel (0) target = $region33
    $region32: #{tpu_custom_call.1} parent=1 // pred_region
      %s1649 = ssub.s32 128, 128
      %1650 = vsyncadd [#allocation4], %s1649
      %s1652 = sshll.u32 [#allocation8], 4
      %s1653 = int_to_ptr.vmem [resolvable:$true] %s1652
      %1655 = dma.vmem_to_hbm [thread:$0]  %s1653, 128, %s4, [#allocation4]
    $region33: #{tpu_custom_call.1} parent=1 // pred_fallthru
      _
    // Predicated region
    $region34: #{tpu_custom_call.1} parent=1 // pred_check
      _
    $region35: #{tpu_custom_call.1} parent=1 // pred_check_branch
      %1657 = sbr.rel (0) target = $region37
    $region36: #{tpu_custom_call.1} parent=1 // pred_region
      %1658 = dma.done [#allocation4], 128
    $region37: #{tpu_custom_call.1} parent=1 // pred_fallthru
      _
    %1659 = vsyncpa [#allocation3], 1
    %1660 = vsyncpa [#allocation6], 1
    %1661 = vsyncpa [#allocation4], 1

</llo_original>
